<compile_context>
chip_gen: v6e
topology: v6e:2x2x1
jax: 0.10.0
libtpu: 0.0.40
codegen_flags: <defaults>
</compile_context>

<pallas_src>
import functools

import jax
import jax.numpy as jnp
from jax.experimental import pallas as pl
from jax.experimental.pallas import tpu as pltpu

KSIZE = 5
PAD = 2
BN_EPS = 1e-5


# ----------------------------------------------------------------------------
# Parameter preparation (wrapper-side, plain XLA).
# ----------------------------------------------------------------------------
def _banded_weights(w_oihw, w_len):
    """(Cout, Cin, 5, 5) torch-layout weights -> (5, W*Cin, W*Cout) banded mats.

    band[kh, w2*Cin + ci, w*Cout + co] = W[co, ci, kh, w2 - w + PAD]
    whenever |w2 - w| <= PAD, else 0.  Contracting an (H, W*Cin) activation
    row-block with band[kh] performs all 5 kw taps (and the Cin contraction)
    of the 5x5 conv for that kh in a single MXU matmul.
    """
    cout, cin = w_oihw.shape[0], w_oihw.shape[1]
    wk = jnp.transpose(w_oihw, (2, 3, 1, 0))            # (KH, KW, Cin, Cout)
    src = jnp.arange(w_len)[:, None]                    # input column  w2
    dst = jnp.arange(w_len)[None, :]                    # output column w
    kw = src - dst + PAD                                # (W, W)
    valid = (kw >= 0) & (kw < KSIZE)
    kw_c = jnp.clip(kw, 0, KSIZE - 1)
    band = wk[:, kw_c]                                  # (KH, W, W, Cin, Cout)
    band = jnp.where(valid[None, :, :, None, None], band, 0.0)
    band = jnp.transpose(band, (0, 1, 3, 2, 4))         # (KH, W, Cin, W, Cout)
    return band.reshape(KSIZE, w_len * cin, w_len * cout)


def _fold_stage(p, w_len, compute_dtype):
    """Banded conv weights + folded (BN affine + conv bias) for one stage."""
    # TODO(synk): training-mode BatchNorm (batch statistics + running-stat
    # updates) is not implemented; eval/inference semantics only.
    cout = p["w"].shape[0]
    scale = p["gamma"] / jnp.sqrt(p["var"] + BN_EPS)
    shift = p["beta"] - p["mean"] * scale + p["b"] * scale   # conv bias folded in
    band = _banded_weights(p["w"], w_len).astype(compute_dtype)
    scale_l = jnp.tile(scale, w_len).reshape(1, w_len * cout)
    shift_l = jnp.tile(shift, w_len).reshape(1, w_len * cout)
    return band, scale_l, shift_l


# ----------------------------------------------------------------------------
# Fused kernel: one batch element per grid step.
# ----------------------------------------------------------------------------
def _double_conv_kernel(x_ref, b1_ref, s1_ref, t1_ref, b2_ref, s2_ref, t2_ref,
                        o_ref, xp1_ref, xp2_ref):
    # x_ref : (1, H, W*Cin)        unpadded input, (w, ci) fused on lanes
    # b*_ref: (5, W*Cin_l, W*Cout) banded weights, one matrix per kh tap
    # s*/t* : (1, W*Cout)          folded BN scale / (BN shift + conv bias)
    # o_ref : (1, H, W*Cout)       lane-dense output
    # xp1/xp2: VMEM scratch, H-zero-padded activations of stage 1 / stage 2
    h = x_ref.shape[1]

    def zero_h_borders(xp_ref):
        z = jnp.zeros((PAD, xp_ref.shape[1]), xp_ref.dtype)
        xp_ref[0:PAD, :] = z
        xp_ref[PAD + h:2 * PAD + h, :] = z

    # In-kernel zero padding along H (W-edge taps are already encoded as zeros
    # inside the banded weights, so no W padding is needed at all).
    zero_h_borders(xp1_ref)
    zero_h_borders(xp2_ref)
    xp1_ref[PAD:PAD + h, :] = x_ref[0].astype(xp1_ref.dtype)

    def conv_bn_relu(xp_ref, b_ref, scale_ref, shift_ref):
        # 5 kh taps -> 5 deep MXU matmuls, f32 accumulation.
        acc = jnp.dot(xp_ref[0:h, :], b_ref[0],
                      preferred_element_type=jnp.float32)
        for kh in range(1, KSIZE):
            acc = acc + jnp.dot(xp_ref[kh:kh + h, :], b_ref[kh],
                                preferred_element_type=jnp.float32)
        # Folded BatchNorm affine (+ conv bias) and ReLU, in f32.
        return jnp.maximum(acc * scale_ref[...] + shift_ref[...], 0.0)

    y1 = conv_bn_relu(xp1_ref, b1_ref, s1_ref, t1_ref)     # (H, W*Cout), f32
    # The intermediate activation never leaves VMEM.
    xp2_ref[PAD:PAD + h, :] = y1.astype(xp2_ref.dtype)

    y2 = conv_bn_relu(xp2_ref, b2_ref, s2_ref, t2_ref)     # (H, W*Cout), f32
    o_ref[...] = y2.reshape(o_ref.shape).astype(o_ref.dtype)


# ----------------------------------------------------------------------------
# Public forward (NCHW in / NCHW out, PyTorch convention).
# ----------------------------------------------------------------------------
@functools.partial(jax.jit, static_argnames=("compute_dtype",))
def double_conv_forward(x_nchw, params, compute_dtype=jnp.float32):
    n, cin, h, w = x_nchw.shape
    cout = params["conv0"]["w"].shape[0]
    hp = h + 2 * PAD

    # NCHW -> (N, H, W*Cin): channels fused onto the lane axis together with W.
    x2d = jnp.transpose(x_nchw, (0, 2, 3, 1)).reshape(n, h, w * cin)
    x2d = x2d.astype(compute_dtype)

    b1, s1, t1 = _fold_stage(params["conv0"], w, compute_dtype)
    b2, s2, t2 = _fold_stage(params["conv1"], w, compute_dtype)

    out = pl.pallas_call(
        _double_conv_kernel,
        out_shape=jax.ShapeDtypeStruct((n, h, w * cout), jnp.float32),
        grid=(n,),
        in_specs=[
            pl.BlockSpec((1, h, w * cin), lambda i: (i, 0, 0)),
            pl.BlockSpec((KSIZE, w * cin, w * cout), lambda i: (0, 0, 0)),
            pl.BlockSpec((1, w * cout), lambda i: (0, 0)),
            pl.BlockSpec((1, w * cout), lambda i: (0, 0)),
            pl.BlockSpec((KSIZE, w * cout, w * cout), lambda i: (0, 0, 0)),
            pl.BlockSpec((1, w * cout), lambda i: (0, 0)),
            pl.BlockSpec((1, w * cout), lambda i: (0, 0)),
        ],
        out_specs=pl.BlockSpec((1, h, w * cout), lambda i: (i, 0, 0)),
        scratch_shapes=[
            pltpu.VMEM((hp, w * cin), compute_dtype),    # padded stage-1 input
            pltpu.VMEM((hp, w * cout), compute_dtype),   # padded stage-2 input
        ],
        compiler_params=pltpu.CompilerParams(
            # Batch axis is independent -> shards across the 2 TCs on v7x.
            dimension_semantics=("parallel",),
        ),
    )(x2d, b1, s1, t1, b2, s2, t2)

    # (N, H, W*Cout) -> NCHW
    return jnp.transpose(out.reshape(n, h, w, cout), (0, 3, 1, 2))


# ----------------------------------------------------------------------------
# Deterministic synthetic parameters (PyTorch Conv2d / BatchNorm2d layouts).
# ----------------------------------------------------------------------------
def init_double_conv_params(key, in_ch, out_ch):
    ks = jax.random.split(key, 12)
    params = {}
    for idx, cin in enumerate((in_ch, out_ch)):
        k = ks[6 * idx:6 * (idx + 1)]
        fan_in = cin * KSIZE * KSIZE
        params[f"conv{idx}"] = dict(
            w=jax.random.normal(k[0], (out_ch, cin, KSIZE, KSIZE), jnp.float32)
              * (1.0 / fan_in ** 0.5),
            b=0.1 * jax.random.normal(k[1], (out_ch,), jnp.float32),
            gamma=1.0 + 0.1 * jax.random.normal(k[2], (out_ch,), jnp.float32),
            beta=0.1 * jax.random.normal(k[3], (out_ch,), jnp.float32),
            mean=0.1 * jax.random.normal(k[4], (out_ch,), jnp.float32),
            var=0.5 + jax.random.uniform(k[5], (out_ch,), jnp.float32),
        )
    return params


def _reference_double_conv(x, params):
    """Pure-JAX reference (lax conv, eval-mode BN) for correctness check."""
    for idx in range(2):
        p = params[f"conv{idx}"]
        y = jax.lax.conv_general_dilated(
            x, p["w"], window_strides=(1, 1),
            padding=((PAD, PAD), (PAD, PAD)),
            dimension_numbers=("NCHW", "OIHW", "NCHW"),
            precision=jax.lax.Precision.HIGHEST)
        y = y + p["b"][None, :, None, None]
        scale = p["gamma"] / jnp.sqrt(p["var"] + BN_EPS)
        shift = p["beta"] - p["mean"] * scale
        y = y * scale[None, :, None, None] + shift[None, :, None, None]
        x = jnp.maximum(y, 0.0)
    return x


if __name__ == "__main__":
    key = jax.random.PRNGKey(0)
    k_x, k_p = jax.random.split(key)

    N, IN_CH, OUT_CH, H, W = 2, 4, 8, 16, 16
    x = jax.random.normal(k_x, (N, IN_CH, H, W), jnp.float32)
    params = init_double_conv_params(k_p, IN_CH, OUT_CH)

    # f32 MXU path (safe default on all generations).
    out = jax.block_until_ready(double_conv_forward(x, params))
    ref = _reference_double_conv(x, params)
    assert out.shape == (N, OUT_CH, H, W)
    assert jnp.allclose(out, ref, atol=2e-2, rtol=2e-2), "f32 mismatch vs reference"

    # bf16 operand path (v6e / v7x): bf16 matmuls, f32 accumulation + epilogue.
    out_bf16 = jax.block_until_ready(
        double_conv_forward(x, params, compute_dtype=jnp.bfloat16))
    assert jnp.allclose(out_bf16, ref, atol=1e-1, rtol=1e-1), "bf16 mismatch vs reference"

    print("KERNEL_OK")
</pallas_src>

<mosaic_0001>
module attributes {stable_mosaic.version = 11 : i64} {
  func.func @_double_conv_kernel(%arg0: i32, %arg1: memref<1x16x64xf32, #tpu.memory_space<vmem>>, %arg2: memref<5x64x128xf32, #tpu.memory_space<vmem>>, %arg3: memref<1x128xf32, #tpu.memory_space<vmem>>, %arg4: memref<1x128xf32, #tpu.memory_space<vmem>>, %arg5: memref<5x128x128xf32, #tpu.memory_space<vmem>>, %arg6: memref<1x128xf32, #tpu.memory_space<vmem>>, %arg7: memref<1x128xf32, #tpu.memory_space<vmem>>, %arg8: memref<1x16x128xf32, #tpu.memory_space<vmem>>, %arg9: memref<20x64xf32, #tpu.memory_space<vmem>>, %arg10: memref<20x128xf32, #tpu.memory_space<vmem>>) attributes {dimension_semantics = [#tpu.dimension_semantics<parallel>], iteration_bounds = array<i64: 2>, scalar_prefetch = 0 : i64, scratch_operands = 2 : i64, tpu.core_type = #tpu.core_type<tc>, window_params = [{transform_indices = @transform_0, window_bounds = array<i64: 1, 16, 64>}, {pipeline_mode = #tpu.pipeline_mode<synchronous>, transform_indices = @transform_1, window_bounds = array<i64: 5, 64, 128>}, {pipeline_mode = #tpu.pipeline_mode<synchronous>, transform_indices = @transform_2, window_bounds = array<i64: 1, 128>}, {pipeline_mode = #tpu.pipeline_mode<synchronous>, transform_indices = @transform_3, window_bounds = array<i64: 1, 128>}, {pipeline_mode = #tpu.pipeline_mode<synchronous>, transform_indices = @transform_4, window_bounds = array<i64: 5, 128, 128>}, {pipeline_mode = #tpu.pipeline_mode<synchronous>, transform_indices = @transform_5, window_bounds = array<i64: 1, 128>}, {pipeline_mode = #tpu.pipeline_mode<synchronous>, transform_indices = @transform_6, window_bounds = array<i64: 1, 128>}, {transform_indices = @transform_7, window_bounds = array<i64: 1, 16, 128>}]} {
    %cst = arith.constant 0.000000e+00 : f32
    %0 = vector.broadcast %cst : f32 to vector<2x64xf32>
    %c0 = arith.constant 0 : index
    %c0_0 = arith.constant 0 : index
    %1 = vector.load %arg9[%c0, %c0_0] : memref<20x64xf32, #tpu.memory_space<vmem>>, vector<2x64xf32>
    tpu.vector_store %arg9[%c0, %c0_0], %0 {strides = array<i32>} : memref<20x64xf32, #tpu.memory_space<vmem>>, vector<2x64xf32>,
    %c18 = arith.constant 18 : index
    %c0_1 = arith.constant 0 : index
    %2 = vector.load %arg9[%c18, %c0_1] : memref<20x64xf32, #tpu.memory_space<vmem>>, vector<2x64xf32>
    tpu.vector_store %arg9[%c18, %c0_1], %0 {strides = array<i32>} : memref<20x64xf32, #tpu.memory_space<vmem>>, vector<2x64xf32>,
    %cst_2 = arith.constant 0.000000e+00 : f32
    %3 = vector.broadcast %cst_2 : f32 to vector<2x128xf32>
    %c0_3 = arith.constant 0 : index
    %c0_4 = arith.constant 0 : index
    %4 = vector.load %arg10[%c0_3, %c0_4] : memref<20x128xf32, #tpu.memory_space<vmem>>, vector<2x128xf32>
    tpu.vector_store %arg10[%c0_3, %c0_4], %3 {strides = array<i32>} : memref<20x128xf32, #tpu.memory_space<vmem>>, vector<2x128xf32>,
    %c18_5 = arith.constant 18 : index
    %c0_6 = arith.constant 0 : index
    %5 = vector.load %arg10[%c18_5, %c0_6] : memref<20x128xf32, #tpu.memory_space<vmem>>, vector<2x128xf32>
    tpu.vector_store %arg10[%c18_5, %c0_6], %3 {strides = array<i32>} : memref<20x128xf32, #tpu.memory_space<vmem>>, vector<2x128xf32>,
    %c0_7 = arith.constant 0 : index
    %c0_8 = arith.constant 0 : index
    %c0_9 = arith.constant 0 : index
    %6 = vector.load %arg1[%c0_7, %c0_8, %c0_9] : memref<1x16x64xf32, #tpu.memory_space<vmem>>, vector<1x16x64xf32>
    %7 = vector.shape_cast %6 : vector<1x16x64xf32> to vector<16x64xf32>
    %c2 = arith.constant 2 : index
    %c0_10 = arith.constant 0 : index
    %8 = vector.load %arg9[%c2, %c0_10] : memref<20x64xf32, #tpu.memory_space<vmem>>, vector<16x64xf32>
    tpu.vector_store %arg9[%c2, %c0_10], %7 {strides = array<i32>} : memref<20x64xf32, #tpu.memory_space<vmem>>, vector<16x64xf32>,
    %c0_11 = arith.constant 0 : index
    %c0_12 = arith.constant 0 : index
    %9 = vector.load %arg9[%c0_11, %c0_12] : memref<20x64xf32, #tpu.memory_space<vmem>>, vector<16x64xf32>
    %c0_13 = arith.constant 0 : index
    %c0_14 = arith.constant 0 : index
    %c0_15 = arith.constant 0 : index
    %10 = vector.load %arg2[%c0_13, %c0_14, %c0_15] : memref<5x64x128xf32, #tpu.memory_space<vmem>>, vector<1x64x128xf32>
    %11 = vector.shape_cast %10 : vector<1x64x128xf32> to vector<64x128xf32>
    %cst_16 = arith.constant dense<0.000000e+00> : vector<16x128xf32>
    %12 = tpu.matmul %9, %11, %cst_16 {dimension_numbers = #tpu.dot_dimension_numbers<[1], [0], [0], [1], [0, 0, 1, 1], [], []>} : vector<16x64xf32>, vector<64x128xf32>, vector<16x128xf32> -> vector<16x128xf32>
    %c1 = arith.constant 1 : index
    %c0_17 = arith.constant 0 : index
    %13 = vector.load %arg9[%c1, %c0_17] : memref<20x64xf32, #tpu.memory_space<vmem>>, vector<16x64xf32>
    %c1_18 = arith.constant 1 : index
    %c0_19 = arith.constant 0 : index
    %c0_20 = arith.constant 0 : index
    %14 = vector.load %arg2[%c1_18, %c0_19, %c0_20] : memref<5x64x128xf32, #tpu.memory_space<vmem>>, vector<1x64x128xf32>
    %15 = vector.shape_cast %14 : vector<1x64x128xf32> to vector<64x128xf32>
    %cst_21 = arith.constant dense<0.000000e+00> : vector<16x128xf32>
    %16 = tpu.matmul %13, %15, %cst_21 {dimension_numbers = #tpu.dot_dimension_numbers<[1], [0], [0], [1], [0, 0, 1, 1], [], []>} : vector<16x64xf32>, vector<64x128xf32>, vector<16x128xf32> -> vector<16x128xf32>
    %17 = arith.addf %12, %16 : vector<16x128xf32>
    %c2_22 = arith.constant 2 : index
    %c0_23 = arith.constant 0 : index
    %18 = vector.load %arg9[%c2_22, %c0_23] : memref<20x64xf32, #tpu.memory_space<vmem>>, vector<16x64xf32>
    %c2_24 = arith.constant 2 : index
    %c0_25 = arith.constant 0 : index
    %c0_26 = arith.constant 0 : index
    %19 = vector.load %arg2[%c2_24, %c0_25, %c0_26] : memref<5x64x128xf32, #tpu.memory_space<vmem>>, vector<1x64x128xf32>
    %20 = vector.shape_cast %19 : vector<1x64x128xf32> to vector<64x128xf32>
    %cst_27 = arith.constant dense<0.000000e+00> : vector<16x128xf32>
    %21 = tpu.matmul %18, %20, %cst_27 {dimension_numbers = #tpu.dot_dimension_numbers<[1], [0], [0], [1], [0, 0, 1, 1], [], []>} : vector<16x64xf32>, vector<64x128xf32>, vector<16x128xf32> -> vector<16x128xf32>
    %22 = arith.addf %17, %21 : vector<16x128xf32>
    %c3 = arith.constant 3 : index
    %c0_28 = arith.constant 0 : index
    %23 = vector.load %arg9[%c3, %c0_28] : memref<20x64xf32, #tpu.memory_space<vmem>>, vector<16x64xf32>
    %c3_29 = arith.constant 3 : index
    %c0_30 = arith.constant 0 : index
    %c0_31 = arith.constant 0 : index
    %24 = vector.load %arg2[%c3_29, %c0_30, %c0_31] : memref<5x64x128xf32, #tpu.memory_space<vmem>>, vector<1x64x128xf32>
    %25 = vector.shape_cast %24 : vector<1x64x128xf32> to vector<64x128xf32>
    %cst_32 = arith.constant dense<0.000000e+00> : vector<16x128xf32>
    %26 = tpu.matmul %23, %25, %cst_32 {dimension_numbers = #tpu.dot_dimension_numbers<[1], [0], [0], [1], [0, 0, 1, 1], [], []>} : vector<16x64xf32>, vector<64x128xf32>, vector<16x128xf32> -> vector<16x128xf32>
    %27 = arith.addf %22, %26 : vector<16x128xf32>
    %c4 = arith.constant 4 : index
    %c0_33 = arith.constant 0 : index
    %28 = vector.load %arg9[%c4, %c0_33] : memref<20x64xf32, #tpu.memory_space<vmem>>, vector<16x64xf32>
    %c4_34 = arith.constant 4 : index
    %c0_35 = arith.constant 0 : index
    %c0_36 = arith.constant 0 : index
    %29 = vector.load %arg2[%c4_34, %c0_35, %c0_36] : memref<5x64x128xf32, #tpu.memory_space<vmem>>, vector<1x64x128xf32>
    %30 = vector.shape_cast %29 : vector<1x64x128xf32> to vector<64x128xf32>
    %cst_37 = arith.constant dense<0.000000e+00> : vector<16x128xf32>
    %31 = tpu.matmul %28, %30, %cst_37 {dimension_numbers = #tpu.dot_dimension_numbers<[1], [0], [0], [1], [0, 0, 1, 1], [], []>} : vector<16x64xf32>, vector<64x128xf32>, vector<16x128xf32> -> vector<16x128xf32>
    %32 = arith.addf %27, %31 : vector<16x128xf32>
    %c0_38 = arith.constant 0 : index
    %c0_39 = arith.constant 0 : index
    %33 = vector.load %arg3[%c0_38, %c0_39] : memref<1x128xf32, #tpu.memory_space<vmem>>, vector<1x128xf32>
    %34 = vector.broadcast %33 : vector<1x128xf32> to vector<16x128xf32>
    %35 = arith.mulf %32, %34 : vector<16x128xf32>
    %c0_40 = arith.constant 0 : index
    %c0_41 = arith.constant 0 : index
    %36 = vector.load %arg4[%c0_40, %c0_41] : memref<1x128xf32, #tpu.memory_space<vmem>>, vector<1x128xf32>
    %37 = vector.broadcast %36 : vector<1x128xf32> to vector<16x128xf32>
    %38 = arith.addf %35, %37 : vector<16x128xf32>
    %cst_42 = arith.constant 0.000000e+00 : f32
    %39 = vector.broadcast %cst_42 : f32 to vector<16x128xf32>
    %40 = arith.maximumf %38, %39 : vector<16x128xf32>
    %c2_43 = arith.constant 2 : index
    %c0_44 = arith.constant 0 : index
    %41 = vector.load %arg10[%c2_43, %c0_44] : memref<20x128xf32, #tpu.memory_space<vmem>>, vector<16x128xf32>
    tpu.vector_store %arg10[%c2_43, %c0_44], %40 {strides = array<i32>} : memref<20x128xf32, #tpu.memory_space<vmem>>, vector<16x128xf32>,
    %c0_45 = arith.constant 0 : index
    %c0_46 = arith.constant 0 : index
    %42 = vector.load %arg10[%c0_45, %c0_46] : memref<20x128xf32, #tpu.memory_space<vmem>>, vector<16x128xf32>
    %c0_47 = arith.constant 0 : index
    %c0_48 = arith.constant 0 : index
    %c0_49 = arith.constant 0 : index
    %43 = vector.load %arg5[%c0_47, %c0_48, %c0_49] : memref<5x128x128xf32, #tpu.memory_space<vmem>>, vector<1x128x128xf32>
    %44 = vector.shape_cast %43 : vector<1x128x128xf32> to vector<128x128xf32>
    %cst_50 = arith.constant dense<0.000000e+00> : vector<16x128xf32>
    %45 = tpu.matmul %42, %44, %cst_50 {dimension_numbers = #tpu.dot_dimension_numbers<[1], [0], [0], [1], [0, 0, 1, 1], [], []>} : vector<16x128xf32>, vector<128x128xf32>, vector<16x128xf32> -> vector<16x128xf32>
    %c1_51 = arith.constant 1 : index
    %c0_52 = arith.constant 0 : index
    %46 = vector.load %arg10[%c1_51, %c0_52] : memref<20x128xf32, #tpu.memory_space<vmem>>, vector<16x128xf32>
    %c1_53 = arith.constant 1 : index
    %c0_54 = arith.constant 0 : index
    %c0_55 = arith.constant 0 : index
    %47 = vector.load %arg5[%c1_53, %c0_54, %c0_55] : memref<5x128x128xf32, #tpu.memory_space<vmem>>, vector<1x128x128xf32>
    %48 = vector.shape_cast %47 : vector<1x128x128xf32> to vector<128x128xf32>
    %cst_56 = arith.constant dense<0.000000e+00> : vector<16x128xf32>
    %49 = tpu.matmul %46, %48, %cst_56 {dimension_numbers = #tpu.dot_dimension_numbers<[1], [0], [0], [1], [0, 0, 1, 1], [], []>} : vector<16x128xf32>, vector<128x128xf32>, vector<16x128xf32> -> vector<16x128xf32>
    %50 = arith.addf %45, %49 : vector<16x128xf32>
    %c2_57 = arith.constant 2 : index
    %c0_58 = arith.constant 0 : index
    %51 = vector.load %arg10[%c2_57, %c0_58] : memref<20x128xf32, #tpu.memory_space<vmem>>, vector<16x128xf32>
    %c2_59 = arith.constant 2 : index
    %c0_60 = arith.constant 0 : index
    %c0_61 = arith.constant 0 : index
    %52 = vector.load %arg5[%c2_59, %c0_60, %c0_61] : memref<5x128x128xf32, #tpu.memory_space<vmem>>, vector<1x128x128xf32>
    %53 = vector.shape_cast %52 : vector<1x128x128xf32> to vector<128x128xf32>
    %cst_62 = arith.constant dense<0.000000e+00> : vector<16x128xf32>
    %54 = tpu.matmul %51, %53, %cst_62 {dimension_numbers = #tpu.dot_dimension_numbers<[1], [0], [0], [1], [0, 0, 1, 1], [], []>} : vector<16x128xf32>, vector<128x128xf32>, vector<16x128xf32> -> vector<16x128xf32>
    %55 = arith.addf %50, %54 : vector<16x128xf32>
    %c3_63 = arith.constant 3 : index
    %c0_64 = arith.constant 0 : index
    %56 = vector.load %arg10[%c3_63, %c0_64] : memref<20x128xf32, #tpu.memory_space<vmem>>, vector<16x128xf32>
    %c3_65 = arith.constant 3 : index
    %c0_66 = arith.constant 0 : index
    %c0_67 = arith.constant 0 : index
    %57 = vector.load %arg5[%c3_65, %c0_66, %c0_67] : memref<5x128x128xf32, #tpu.memory_space<vmem>>, vector<1x128x128xf32>
    %58 = vector.shape_cast %57 : vector<1x128x128xf32> to vector<128x128xf32>
    %cst_68 = arith.constant dense<0.000000e+00> : vector<16x128xf32>
    %59 = tpu.matmul %56, %58, %cst_68 {dimension_numbers = #tpu.dot_dimension_numbers<[1], [0], [0], [1], [0, 0, 1, 1], [], []>} : vector<16x128xf32>, vector<128x128xf32>, vector<16x128xf32> -> vector<16x128xf32>
    %60 = arith.addf %55, %59 : vector<16x128xf32>
    %c4_69 = arith.constant 4 : index
    %c0_70 = arith.constant 0 : index
    %61 = vector.load %arg10[%c4_69, %c0_70] : memref<20x128xf32, #tpu.memory_space<vmem>>, vector<16x128xf32>
    %c4_71 = arith.constant 4 : index
    %c0_72 = arith.constant 0 : index
    %c0_73 = arith.constant 0 : index
    %62 = vector.load %arg5[%c4_71, %c0_72, %c0_73] : memref<5x128x128xf32, #tpu.memory_space<vmem>>, vector<1x128x128xf32>
    %63 = vector.shape_cast %62 : vector<1x128x128xf32> to vector<128x128xf32>
    %cst_74 = arith.constant dense<0.000000e+00> : vector<16x128xf32>
    %64 = tpu.matmul %61, %63, %cst_74 {dimension_numbers = #tpu.dot_dimension_numbers<[1], [0], [0], [1], [0, 0, 1, 1], [], []>} : vector<16x128xf32>, vector<128x128xf32>, vector<16x128xf32> -> vector<16x128xf32>
    %65 = arith.addf %60, %64 : vector<16x128xf32>
    %c0_75 = arith.constant 0 : index
    %c0_76 = arith.constant 0 : index
    %66 = vector.load %arg6[%c0_75, %c0_76] : memref<1x128xf32, #tpu.memory_space<vmem>>, vector<1x128xf32>
    %67 = vector.broadcast %66 : vector<1x128xf32> to vector<16x128xf32>
    %68 = arith.mulf %65, %67 : vector<16x128xf32>
    %c0_77 = arith.constant 0 : index
    %c0_78 = arith.constant 0 : index
    %69 = vector.load %arg7[%c0_77, %c0_78] : memref<1x128xf32, #tpu.memory_space<vmem>>, vector<1x128xf32>
    %70 = vector.broadcast %69 : vector<1x128xf32> to vector<16x128xf32>
    %71 = arith.addf %68, %70 : vector<16x128xf32>
    %cst_79 = arith.constant 0.000000e+00 : f32
    %72 = vector.broadcast %cst_79 : f32 to vector<16x128xf32>
    %73 = arith.maximumf %71, %72 : vector<16x128xf32>
    %74 = vector.shape_cast %73 : vector<16x128xf32> to vector<1x16x128xf32>
    %c0_80 = arith.constant 0 : index
    %c0_81 = arith.constant 0 : index
    %c0_82 = arith.constant 0 : index
    %75 = vector.load %arg8[%c0_80, %c0_81, %c0_82] : memref<1x16x128xf32, #tpu.memory_space<vmem>>, vector<1x16x128xf32>
    tpu.vector_store %arg8[%c0_80, %c0_81, %c0_82], %74 {strides = array<i32>} : memref<1x16x128xf32, #tpu.memory_space<vmem>>, vector<1x16x128xf32>,
    return
  }
  func.func @transform_0(%arg0: i32) -> (i32, i32, i32) {
    %c0_i32 = arith.constant 0 : i32
    %c0_i32_0 = arith.constant 0 : i32
    %c0_i32_1 = arith.constant 0 : i32
    return %arg0, %c0_i32, %c0_i32_0 : i32, i32, i32
  }
  func.func @transform_1(%arg0: i32) -> (i32, i32, i32) {
    %c0_i32 = arith.constant 0 : i32
    %c0_i32_0 = arith.constant 0 : i32
    %c0_i32_1 = arith.constant 0 : i32
    %c0_i32_2 = arith.constant 0 : i32
    return %c0_i32, %c0_i32_0, %c0_i32_1 : i32, i32, i32
  }
  func.func @transform_2(%arg0: i32) -> (i32, i32) {
    %c0_i32 = arith.constant 0 : i32
    %c0_i32_0 = arith.constant 0 : i32
    %c0_i32_1 = arith.constant 0 : i32
    return %c0_i32, %c0_i32_0 : i32, i32
  }
  func.func @transform_3(%arg0: i32) -> (i32, i32) {
    %c0_i32 = arith.constant 0 : i32
    %c0_i32_0 = arith.constant 0 : i32
    %c0_i32_1 = arith.constant 0 : i32
    return %c0_i32, %c0_i32_0 : i32, i32
  }
  func.func @transform_4(%arg0: i32) -> (i32, i32, i32) {
    %c0_i32 = arith.constant 0 : i32
    %c0_i32_0 = arith.constant 0 : i32
    %c0_i32_1 = arith.constant 0 : i32
    %c0_i32_2 = arith.constant 0 : i32
    return %c0_i32, %c0_i32_0, %c0_i32_1 : i32, i32, i32
  }
  func.func @transform_5(%arg0: i32) -> (i32, i32) {
    %c0_i32 = arith.constant 0 : i32
    %c0_i32_0 = arith.constant 0 : i32
    %c0_i32_1 = arith.constant 0 : i32
    return %c0_i32, %c0_i32_0 : i32, i32
  }
  func.func @transform_6(%arg0: i32) -> (i32, i32) {
    %c0_i32 = arith.constant 0 : i32
    %c0_i32_0 = arith.constant 0 : i32
    %c0_i32_1 = arith.constant 0 : i32
    return %c0_i32, %c0_i32_0 : i32, i32
  }
  func.func @transform_7(%arg0: i32) -> (i32, i32, i32) {
    %c0_i32 = arith.constant 0 : i32
    %c0_i32_0 = arith.constant 0 : i32
    %c0_i32_1 = arith.constant 0 : i32
    return %arg0, %c0_i32, %c0_i32_0 : i32, i32, i32
  }
}

</mosaic_0001>

<llo_original>
// kernel: tile.23
$region0: #{tile.23}
  #allocation0 [shape = 's32[1]{0}', space=sflag, size = 0x4, scoped, tag = 'scoped memory for tile.23']
  %s0 = inlined_call_operand.vmem [shape: f32[8], index: 0, kind: input, shape index: {}]
  %s1 = inlined_call_operand.vmem [shape: f32[16,8], index: 1, kind: output, shape index: {}]
  // Predicated region
  $region2: #{tile.23} parent=0 // pred_check
    _
  $region3: #{tile.23} parent=0 // pred_check_branch
    %3 = sbr.rel (0) target = $region5
  $region4: #{tile.23} parent=0 // pred_region
    _
  $region5: #{tile.23} parent=0 // pred_fallthru
    _
  %v4 = vld [vmem:[%s0] ss:$0 sm:$0xff]
  %5 = vst [vmem:[%s1] sm:$0xff] %v4
  %s6 = scalar_lea.vmem %s1, 8
  %7 = vst [vmem:[%s6] sm:$0xff] %v4

// kernel: tile.24
$region0: #{tile.24}
  %s0 = inlined_call_operand.vmem [shape: f32[16,8], index: 0, kind: input, shape index: {}]
  %s1 = inlined_call_operand.vmem [shape: f32[1,128], index: 1, kind: output, shape index: {}]
  $region1: #{tile.24} parent=0
    #allocation0 [shape = 'u8[4096]{0}', space=vmem, size = 0x1000, scoped, tag = 'scoped mem for output reshape']
    %v2 = vld [vmem:[%s0] sm:$0x1]
    %vm3 = vcmask 64512
    %4 = vst.msk [vmem:[#allocation0] sm:$0x1] %vm3, %v2
    %s5 = scalar_lea.vmem %s0, 15
    %v6 = vld [vmem:[%s5] sm:$0x1]
    %7 = vrot.lane.b32.xlu0 %v6, 120
    %v8 = vpop.permute.xlu0 %7
    %vm9 = vcmask 1048512
    %10 = vst.msk [vmem:[#allocation0] sm:$0x1] %vm9, %v8
    %s11 = scalar_lea.vmem %s0, 14
    %v12 = vld [vmem:[%s11] sm:$0x1]
    %13 = vrot.lane.b32.xlu0 %v12, 112
    %v14 = vpop.permute.xlu0 %13
    %vm15 = vcmask 982912
    %16 = vst.msk [vmem:[#allocation0] sm:$0x1] %vm15, %v14
    %s17 = scalar_lea.vmem %s0, 13
    %v18 = vld [vmem:[%s17] sm:$0x1]
    %19 = vrot.lane.b32.xlu0 %v18, 104
    %v20 = vpop.permute.xlu0 %19
    %vm21 = vcmask 917312
    %22 = vst.msk [vmem:[#allocation0] sm:$0x1] %vm21, %v20
    %s23 = scalar_lea.vmem %s0, 12
    %v24 = vld [vmem:[%s23] sm:$0x1]
    %25 = vrot.lane.b32.xlu0 %v24, 96
    %v26 = vpop.permute.xlu0 %25
    %vm27 = vcmask 851712
    %28 = vst.msk [vmem:[#allocation0] sm:$0x1] %vm27, %v26
    %s29 = scalar_lea.vmem %s0, 11
    %v30 = vld [vmem:[%s29] sm:$0x1]
    %31 = vrot.lane.b32.xlu0 %v30, 88
    %v32 = vpop.permute.xlu0 %31
    %vm33 = vcmask 786112
    %34 = vst.msk [vmem:[#allocation0] sm:$0x1] %vm33, %v32
    %s35 = scalar_lea.vmem %s0, 10
    %v36 = vld [vmem:[%s35] sm:$0x1]
    %37 = vrot.lane.b32.xlu0 %v36, 80
    %v38 = vpop.permute.xlu0 %37
    %vm39 = vcmask 720512
    %40 = vst.msk [vmem:[#allocation0] sm:$0x1] %vm39, %v38
    %s41 = scalar_lea.vmem %s0, 9
    %v42 = vld [vmem:[%s41] sm:$0x1]
    %43 = vrot.lane.b32.xlu0 %v42, 72
    %v44 = vpop.permute.xlu0 %43
    %vm45 = vcmask 654912
    %46 = vst.msk [vmem:[#allocation0] sm:$0x1] %vm45, %v44
    %s47 = scalar_lea.vmem %s0, 8
    %v48 = vld [vmem:[%s47] sm:$0x1]
    %49 = vrot.lane.b32.xlu0 %v48, 64
    %v50 = vpop.permute.xlu0 %49
    %vm51 = vcmask 589312
    %52 = vst.msk [vmem:[#allocation0] sm:$0x1] %vm51, %v50
    %s53 = scalar_lea.vmem %s0, 7
    %v54 = vld [vmem:[%s53] sm:$0x1]
    %55 = vrot.lane.b32.xlu0 %v54, 56
    %v56 = vpop.permute.xlu0 %55
    %vm57 = vcmask 523712
    %58 = vst.msk [vmem:[#allocation0] sm:$0x1] %vm57, %v56
    %s59 = scalar_lea.vmem %s0, 6
    %v60 = vld [vmem:[%s59] sm:$0x1]
    %61 = vrot.lane.b32.xlu0 %v60, 48
    %v62 = vpop.permute.xlu0 %61
    %vm63 = vcmask 458112
    %64 = vst.msk [vmem:[#allocation0] sm:$0x1] %vm63, %v62
    %s65 = scalar_lea.vmem %s0, 5
    %v66 = vld [vmem:[%s65] sm:$0x1]
    %67 = vrot.lane.b32.xlu0 %v66, 40
    %v68 = vpop.permute.xlu0 %67
    %vm69 = vcmask 392512
    %70 = vst.msk [vmem:[#allocation0] sm:$0x1] %vm69, %v68
    %s71 = scalar_lea.vmem %s0, 4
    %v72 = vld [vmem:[%s71] sm:$0x1]
    %73 = vrot.lane.b32.xlu0 %v72, 32
    %v74 = vpop.permute.xlu0 %73
    %vm75 = vcmask 326912
    %76 = vst.msk [vmem:[#allocation0] sm:$0x1] %vm75, %v74
    %s77 = scalar_lea.vmem %s0, 3
    %v78 = vld [vmem:[%s77] sm:$0x1]
    %79 = vrot.lane.b32.xlu0 %v78, 24
    %v80 = vpop.permute.xlu0 %79
    %vm81 = vcmask 261312
    %82 = vst.msk [vmem:[#allocation0] sm:$0x1] %vm81, %v80
    %s83 = scalar_lea.vmem %s0, 2
    %v84 = vld [vmem:[%s83] sm:$0x1]
    %85 = vrot.lane.b32.xlu0 %v84, 16
    %v86 = vpop.permute.xlu0 %85
    %vm87 = vcmask 195712
    %88 = vst.msk [vmem:[#allocation0] sm:$0x1] %vm87, %v86
    %s89 = scalar_lea.vmem %s0, 1
    %v90 = vld [vmem:[%s89] sm:$0x1]
    %91 = vrot.lane.b32.xlu0 %v90, 8
    %v92 = vpop.permute.xlu0 %91
    %vm93 = vcmask 130112
    %94 = vst.msk [vmem:[#allocation0] sm:$0x1] %vm93, %v92
    %s96 = sshll.u32 1, 1
    %s97 = ssub.s32 %s96, 1
    %v99 = vld [vmem:[#allocation0] sm:%s97]
    %s100 = sshll.u32 1, 1
    %s101 = ssub.s32 %s100, 1
    %102 = vst [vmem:[%s1] sm:%s101] %v99

// kernel: double_conv_forward.1
$region0: #{double_conv_forward.1}
  #allocation0 [shape = 'u32[]', space=smem, size = 0x4, offset = 0x4, fixed_abs, tag = 'smem constant byte address 0x4 - core index']
  #allocation1 [shape = 'u32[144,128]{1,0:T(1,128)}', space=vmem, size = 0x12000, scoped, tag = 'internal scratch']
  #allocation2 [shape = 'f32[20,64]{1,0:T(8,128)}', space=vmem, size = 0x3000, scoped, tag = 'scratch operand']
  #allocation3 [shape = 'f32[20,128]{1,0:T(8,128)}', space=vmem, size = 0x3000, scoped, tag = 'scratch operand']
  %s0 = inlined_call_operand.vmem [shape: f32[2,16,64], index: 0, kind: input, shape index: {}]
  %s1 = inlined_call_operand.vmem [shape: f32[5,64,128], index: 1, kind: input, shape index: {}]
  %s2 = inlined_call_operand.vmem [shape: f32[1,128], index: 2, kind: input, shape index: {}]
  %s3 = inlined_call_operand.vmem [shape: f32[1,128], index: 3, kind: input, shape index: {}]
  %s4 = inlined_call_operand.vmem [shape: f32[5,128,128], index: 4, kind: input, shape index: {}]
  %s5 = inlined_call_operand.vmem [shape: f32[1,128], index: 5, kind: input, shape index: {}]
  %s6 = inlined_call_operand.vmem [shape: f32[1,128], index: 6, kind: input, shape index: {}]
  %s7 = inlined_call_operand.vmem [shape: f32[2,16,128], index: 7, kind: output, shape index: {}]
  %s8 = sld [smem:[#allocation0]]
  $region61: #{double_conv_forward.1} parent=0
    _
  %s10 = ssub.s32 1, %s8
  %s11 = scalar_select 0, %s10, %s8
  loop: start=0, step=1, limit=4
  $region2: #{double_conv_forward.1} parent=0 // loop_pre_header
    _
  $region3: #{double_conv_forward.1} parent=0 // loop_header
    %s13 = sphi 0, %s17
    %p14 = scmp.ge.s32.totalorder %s13, 4
    %s23 = sphi 0, %s25
    %s26 = sphi 0, %s23
    %s27 = sphi 0, %s26
    %s43 = sphi 0, %s27
    %s47 = sphi 0, %s47
    %s49 = sphi 0, %s47
    %s50 = sphi 0, %s49
    %s64 = sphi 0, %s50
    %s68 = sphi 0, %s68
    %s70 = sphi 0, %s68
    %s71 = sphi 0, %s70
    %s85 = sphi 0, %s71
    %s89 = sphi 0, %s89
    %s91 = sphi 0, %s89
    %s92 = sphi 0, %s91
    %s106 = sphi 0, %s92
    %s110 = sphi 0, %s110
    %s112 = sphi 0, %s110
    %s113 = sphi 0, %s112
    %s127 = sphi 0, %s113
    %s131 = sphi 0, %s131
    %s133 = sphi 0, %s131
    %s134 = sphi 0, %s133
    %s148 = sphi 0, %s134
    %s152 = sphi 0, %s152
    %s154 = sphi 0, %s152
    %s155 = sphi 0, %s154
    %s169 = sphi 0, %s155
    %s175 = sphi 0, %s177
    %s178 = sphi 0, %s175
    %s179 = sphi 0, %s178
    %s195 = sphi 0, %s179
  $region4: #{double_conv_forward.1} parent=0 // loop_header_branch
    %16 = sbr.rel (%p14) target = $region8
  $region5: #{double_conv_forward.1} parent=0 // loop_body
    %s18 = ssub.s32 %s13, 1
    %s19 = ssub.s32 %s13, 2
    %s20 = sadd.s32 %s13, 1
    %s21 = ssub.s32 %s13, %s20
    %p22 = scmp.eq.s32.totalorder %s21, 0
    %s24 = sadd.s32 %s23, 1
    %s25 = scalar_select %p22, %s23, %s24
    %p28 = pneg %p22
    %p29 = scmp.eq.s32.totalorder %s13, 1
    %p30 = por %p28, %p29
    %p31 = scmp.ne.s32.totalorder %s23, %s26
    %p32 = scmp.eq.s32.totalorder %s13, 0
    %p33 = por %p31, %p32
    %p34 = scmp.ne.s32.totalorder %s23, %s26
    %p35 = scmp.eq.s32.totalorder %s18, 1
    %p36 = por %p34, %p35
    %p37 = scmp.ne.s32.totalorder %s26, %s27
    %p38 = scmp.eq.s32.totalorder %s18, 0
    %p39 = por %p37, %p38
    %p40 = scmp.ne.s32.totalorder %s26, %s27
    %p41 = scmp.eq.s32.totalorder %s19, 1
    %p42 = por %p40, %p41
    %p44 = scmp.ne.s32.totalorder %s27, %s43
    %p45 = scmp.eq.s32.totalorder %s19, 0
    %p46 = por %p44, %p45
    %s48 = sadd.s32 %s47, 1
    %p51 = scmp.eq.s32.totalorder %s13, 1
    %p52 = scmp.ne.s32.totalorder %s47, %s49
    %p53 = scmp.eq.s32.totalorder %s13, 0
    %p54 = por %p52, %p53
    %p55 = scmp.ne.s32.totalorder %s47, %s49
    %p56 = scmp.eq.s32.totalorder %s18, 1
    %p57 = por %p55, %p56
    %p58 = scmp.ne.s32.totalorder %s49, %s50
    %p59 = scmp.eq.s32.totalorder %s18, 0
    %p60 = por %p58, %p59
    %p61 = scmp.ne.s32.totalorder %s49, %s50
    %p62 = scmp.eq.s32.totalorder %s19, 1
    %p63 = por %p61, %p62
    %p65 = scmp.ne.s32.totalorder %s50, %s64
    %p66 = scmp.eq.s32.totalorder %s19, 0
    %p67 = por %p65, %p66
    %s69 = sadd.s32 %s68, 1
    %p72 = scmp.eq.s32.totalorder %s13, 1
    %p73 = scmp.ne.s32.totalorder %s68, %s70
    %p74 = scmp.eq.s32.totalorder %s13, 0
    %p75 = por %p73, %p74
    %p76 = scmp.ne.s32.totalorder %s68, %s70
    %p77 = scmp.eq.s32.totalorder %s18, 1
    %p78 = por %p76, %p77
    %p79 = scmp.ne.s32.totalorder %s70, %s71
    %p80 = scmp.eq.s32.totalorder %s18, 0
    %p81 = por %p79, %p80
    %p82 = scmp.ne.s32.totalorder %s70, %s71
    %p83 = scmp.eq.s32.totalorder %s19, 1
    %p84 = por %p82, %p83
    %p86 = scmp.ne.s32.totalorder %s71, %s85
    %p87 = scmp.eq.s32.totalorder %s19, 0
    %p88 = por %p86, %p87
    %s90 = sadd.s32 %s89, 1
    %p93 = scmp.eq.s32.totalorder %s13, 1
    %p94 = scmp.ne.s32.totalorder %s89, %s91
    %p95 = scmp.eq.s32.totalorder %s13, 0
    %p96 = por %p94, %p95
    %p97 = scmp.ne.s32.totalorder %s89, %s91
    %p98 = scmp.eq.s32.totalorder %s18, 1
    %p99 = por %p97, %p98
    %p100 = scmp.ne.s32.totalorder %s91, %s92
    %p101 = scmp.eq.s32.totalorder %s18, 0
    %p102 = por %p100, %p101
    %p103 = scmp.ne.s32.totalorder %s91, %s92
    %p104 = scmp.eq.s32.totalorder %s19, 1
    %p105 = por %p103, %p104
    %p107 = scmp.ne.s32.totalorder %s92, %s106
    %p108 = scmp.eq.s32.totalorder %s19, 0
    %p109 = por %p107, %p108
    %s111 = sadd.s32 %s110, 1
    %p114 = scmp.eq.s32.totalorder %s13, 1
    %p115 = scmp.ne.s32.totalorder %s110, %s112
    %p116 = scmp.eq.s32.totalorder %s13, 0
    %p117 = por %p115, %p116
    %p118 = scmp.ne.s32.totalorder %s110, %s112
    %p119 = scmp.eq.s32.totalorder %s18, 1
    %p120 = por %p118, %p119
    %p121 = scmp.ne.s32.totalorder %s112, %s113
    %p122 = scmp.eq.s32.totalorder %s18, 0
    %p123 = por %p121, %p122
    %p124 = scmp.ne.s32.totalorder %s112, %s113
    %p125 = scmp.eq.s32.totalorder %s19, 1
    %p126 = por %p124, %p125
    %p128 = scmp.ne.s32.totalorder %s113, %s127
    %p129 = scmp.eq.s32.totalorder %s19, 0
    %p130 = por %p128, %p129
    %s132 = sadd.s32 %s131, 1
    %p135 = scmp.eq.s32.totalorder %s13, 1
    %p136 = scmp.ne.s32.totalorder %s131, %s133
    %p137 = scmp.eq.s32.totalorder %s13, 0
    %p138 = por %p136, %p137
    %p139 = scmp.ne.s32.totalorder %s131, %s133
    %p140 = scmp.eq.s32.totalorder %s18, 1
    %p141 = por %p139, %p140
    %p142 = scmp.ne.s32.totalorder %s133, %s134
    %p143 = scmp.eq.s32.totalorder %s18, 0
    %p144 = por %p142, %p143
    %p145 = scmp.ne.s32.totalorder %s133, %s134
    %p146 = scmp.eq.s32.totalorder %s19, 1
    %p147 = por %p145, %p146
    %p149 = scmp.ne.s32.totalorder %s134, %s148
    %p150 = scmp.eq.s32.totalorder %s19, 0
    %p151 = por %p149, %p150
    %s153 = sadd.s32 %s152, 1
    %p156 = scmp.eq.s32.totalorder %s13, 1
    %p157 = scmp.ne.s32.totalorder %s152, %s154
    %p158 = scmp.eq.s32.totalorder %s13, 0
    %p159 = por %p157, %p158
    %p160 = scmp.ne.s32.totalorder %s152, %s154
    %p161 = scmp.eq.s32.totalorder %s18, 1
    %p162 = por %p160, %p161
    %p163 = scmp.ne.s32.totalorder %s154, %s155
    %p164 = scmp.eq.s32.totalorder %s18, 0
    %p165 = por %p163, %p164
    %p166 = scmp.ne.s32.totalorder %s154, %s155
    %p167 = scmp.eq.s32.totalorder %s19, 1
    %p168 = por %p166, %p167
    %p170 = scmp.ne.s32.totalorder %s155, %s169
    %p171 = scmp.eq.s32.totalorder %s19, 0
    %p172 = por %p170, %p171
    %s173 = ssub.s32 %s13, %s20
    %p174 = scmp.eq.s32.totalorder %s173, 0
    %s176 = sadd.s32 %s175, 1
    %s177 = scalar_select %p174, %s175, %s176
    %p180 = pneg %p174
    %p181 = scmp.eq.s32.totalorder %s13, 1
    %p182 = por %p180, %p181
    %p183 = scmp.ne.s32.totalorder %s175, %s178
    %p184 = scmp.eq.s32.totalorder %s13, 0
    %p185 = por %p183, %p184
    %p186 = scmp.ne.s32.totalorder %s175, %s178
    %p187 = scmp.eq.s32.totalorder %s18, 1
    %p188 = por %p186, %p187
    %p189 = scmp.ne.s32.totalorder %s178, %s179
    %p190 = scmp.eq.s32.totalorder %s18, 0
    %p191 = por %p189, %p190
    %p192 = scmp.ne.s32.totalorder %s178, %s179
    %p193 = scmp.eq.s32.totalorder %s19, 1
    %p194 = por %p192, %p193
    %p196 = scmp.ne.s32.totalorder %s179, %s195
    %p197 = scmp.eq.s32.totalorder %s19, 0
    %p198 = por %p196, %p197
    %p199 = scmp.le.s32.totalorder 1, %s13
    %p200 = scmp.lt.s32.totalorder %s13, 3
    %p201 = pnand %p199, %p200
    %p202 = pneg %p201
    // Predicated region
    $region9: #{double_conv_forward.1} parent=5 // pred_check
      _
    $region10: #{double_conv_forward.1} parent=5 // pred_check_branch
      %204 = sbr.rel (%p201) target = $region12
    $region11: #{double_conv_forward.1} parent=5 // pred_region
      %s205 = ssub.s32 %s13, 1
      // Predicated region
      $region13: #{double_conv_forward.1} parent=11 // pred_check
        %p206 = pneg %p60
      $region14: #{double_conv_forward.1} parent=11 // pred_check_branch
        %208 = sbr.rel (%p206) target = $region16
      $region15: #{double_conv_forward.1} parent=11 // pred_region
        _
      $region16: #{double_conv_forward.1} parent=11 // pred_fallthru
        _
      // Predicated region
      $region17: #{double_conv_forward.1} parent=11 // pred_check
        %p209 = pneg %p81
      $region18: #{double_conv_forward.1} parent=11 // pred_check_branch
        %211 = sbr.rel (%p209) target = $region20
      $region19: #{double_conv_forward.1} parent=11 // pred_region
        _
      $region20: #{double_conv_forward.1} parent=11 // pred_fallthru
        _
      // Predicated region
      $region21: #{double_conv_forward.1} parent=11 // pred_check
        %p212 = pneg %p102
      $region22: #{double_conv_forward.1} parent=11 // pred_check_branch
        %214 = sbr.rel (%p212) target = $region24
      $region23: #{double_conv_forward.1} parent=11 // pred_region
        _
      $region24: #{double_conv_forward.1} parent=11 // pred_fallthru
        _
      // Predicated region
      $region25: #{double_conv_forward.1} parent=11 // pred_check
        %p215 = pneg %p123
      $region26: #{double_conv_forward.1} parent=11 // pred_check_branch
        %217 = sbr.rel (%p215) target = $region28
      $region27: #{double_conv_forward.1} parent=11 // pred_region
        _
      $region28: #{double_conv_forward.1} parent=11 // pred_fallthru
        _
      // Predicated region
      $region29: #{double_conv_forward.1} parent=11 // pred_check
        %p218 = pneg %p144
      $region30: #{double_conv_forward.1} parent=11 // pred_check_branch
        %220 = sbr.rel (%p218) target = $region32
      $region31: #{double_conv_forward.1} parent=11 // pred_region
        _
      $region32: #{double_conv_forward.1} parent=11 // pred_fallthru
        _
      // Predicated region
      $region33: #{double_conv_forward.1} parent=11 // pred_check
        %p221 = pneg %p165
      $region34: #{double_conv_forward.1} parent=11 // pred_check_branch
        %223 = sbr.rel (%p221) target = $region36
      $region35: #{double_conv_forward.1} parent=11 // pred_region
        _
      $region36: #{double_conv_forward.1} parent=11 // pred_fallthru
        _
    $region12: #{double_conv_forward.1} parent=5 // pred_fallthru
      _
    %p224 = scmp.lt.s32.totalorder %s13, 2
    // Predicated region
    $region37: #{double_conv_forward.1} parent=5 // pred_check
      %p225 = pneg %p224
    $region38: #{double_conv_forward.1} parent=5 // pred_check_branch
      %227 = sbr.rel (%p225) target = $region40
    $region39: #{double_conv_forward.1} parent=5 // pred_region
      // Predicated region
      $region41: #{double_conv_forward.1} parent=39 // pred_check
        %p228 = pneg %p33
      $region42: #{double_conv_forward.1} parent=39 // pred_check_branch
        %230 = sbr.rel (%p228) target = $region44
      $region43: #{double_conv_forward.1} parent=39 // pred_region
        %p231 = scmp.lt.s32.totalorder %s13, 1
        %s232 = scalar_select %p231, %s13, 1
        %s233 = smul.addr %s232, 2
        %s234 = smul.addr %s233, 8
        %s235 = scalar_lea.vmem %s0, %s234
      $region44: #{double_conv_forward.1} parent=39 // pred_fallthru
        _
    $region40: #{double_conv_forward.1} parent=5 // pred_fallthru
      _
    %p236 = scmp.le.s32.totalorder 1, %s13
    %p237 = scmp.lt.s32.totalorder %s13, 3
    %p238 = pnand %p236, %p237
    %p239 = pneg %p238
    // Predicated region
    $region45: #{double_conv_forward.1} parent=5 // pred_check
      _
    $region46: #{double_conv_forward.1} parent=5 // pred_check_branch
      %241 = sbr.rel (%p238) target = $region48
    $region47: #{double_conv_forward.1} parent=5 // pred_region
      %s242 = ssub.s32 %s13, 1
      %p243 = scmp.lt.s32.totalorder %s18, 1
      %s244 = scalar_select %p243, %s18, 1
      %s245 = smul.addr %s244, 2
      %s246 = smul.addr %s245, 8
      %s247 = scalar_lea.vmem %s0, %s246
      %p248 = pneg %p39
      %p249 = pneg %p36
      %p250 = pneg %p60
      %p251 = pneg %p57
      %p252 = pneg %p81
      %p253 = pneg %p78
      %p254 = pneg %p102
      %p255 = pneg %p99
      %p256 = pneg %p123
      %p257 = pneg %p120
      %p258 = pneg %p144
      %p259 = pneg %p141
      %p260 = pneg %p165
      %p261 = pneg %p162
      %p262 = pneg %p191
      %p263 = pneg %p188
      %p264 = scmp.lt.s32.totalorder %s18, 1
      %s265 = scalar_select %p264, %s18, 1
      %s266 = smul.addr %s265, 2
      %s267 = smul.addr %s266, 8
      %s268 = scalar_lea.vmem %s7, %s267
      %p269 = scmp.lt.s32.totalorder %s18, 1
      %s270 = scalar_select %p269, %s18, 1
      %s271 = smul.addr %s270, 2
      %s272 = smul.addr %s271, 8
      %s273 = scalar_lea.vmem %s0, %s272
      %p274 = scmp.lt.s32.totalorder %s18, 1
      %s275 = scalar_select %p274, %s18, 1
      %s276 = smul.addr %s275, 2
      %s277 = smul.addr %s276, 8
      %s278 = scalar_lea.vmem %s7, %s277
      %vm279 = vcmask 517120
      %280 = vst.msk [vmem:[#allocation2] sm:$0x3] %vm279, 0.0
      %281 = vst.msk [vmem:[#allocation2 + $0x12] sm:$0x3] %vm279, 0.0
      %282 = vst [vmem:[#allocation3] sm:$0x3] 0.0
      %283 = vst [vmem:[#allocation3 + $0x12] sm:$0x3] 0.0
      %v284 = vld [vmem:[%s273] sm:$0xff]
      %v285 = vld [vmem:[%s273 + $0x8] sm:$0xff]
      %vm286 = vcmask 523264
      %287 = vst.msk [vmem:[#allocation2 + $0x2] sm:$0xff] %vm286, %v284
      %288 = vst.msk [vmem:[#allocation2 + $0xa] sm:$0xff] %vm286, %v285
      %v289 = vld [vmem:[#allocation2] sm:$0xff]
      %v290 = vld [vmem:[#allocation2 + $0x8] sm:$0xff]
      %v291 = vld [vmem:[%s1] sm:$0xff]
      %v292 = vld [vmem:[%s1 + $0x8] sm:$0xff]
      %v293 = vld [vmem:[%s1 + $0x10] sm:$0xff]
      %v294 = vld [vmem:[%s1 + $0x18] sm:$0xff]
      %v295 = vld [vmem:[%s1 + $0x20] sm:$0xff]
      %v296 = vld [vmem:[%s1 + $0x28] sm:$0xff]
      %v297 = vld [vmem:[%s1 + $0x30] sm:$0xff]
      %v298 = vld [vmem:[%s1 + $0x38] sm:$0xff]
      %v299 = vld [vmem:[#allocation2 + $0x1] sm:$0xff]
      %v300 = vld [vmem:[#allocation2 + $0x9] sm:$0xff]
      %s301 = scalar_lea.vmem %s1, 64
      %v302 = vld [vmem:[%s301] sm:$0xff]
      %v303 = vld [vmem:[%s301 + $0x8] sm:$0xff]
      %v304 = vld [vmem:[%s301 + $0x10] sm:$0xff]
      %v305 = vld [vmem:[%s301 + $0x18] sm:$0xff]
      %v306 = vld [vmem:[%s301 + $0x20] sm:$0xff]
      %v307 = vld [vmem:[%s301 + $0x28] sm:$0xff]
      %v308 = vld [vmem:[%s301 + $0x30] sm:$0xff]
      %v309 = vld [vmem:[%s301 + $0x38] sm:$0xff]
      %v311 = vsel %vm286, %v299, 0
      %v314 = vsel %vm286, %v300, 0
      %316 = vmatprep.subr.mxu0 0.0
      %317 = vmatpush1.msra.mxu0 0.0
      %318 = vmatprep.subr.mxu0 0.0
      %319 = vmatpush1.msra.mxu0 0.0
      %320 = vmatprep.subr.mxu0 0.0
      %321 = vmatpush1.msra.mxu0 0.0
      %322 = vmatprep.subr.mxu0 0.0
      %323 = vmatpush1.msra.mxu0 0.0
      %324 = vmatprep.subr.mxu0 0.0
      %325 = vmatpush1.msra.mxu0 0.0
      %326 = vmatprep.subr.mxu0 0.0
      %327 = vmatpush1.msra.mxu0 0.0
      %328 = vmatprep.subr.mxu0 0.0
      %329 = vmatpush1.msra.mxu0 0.0
      %330 = vmatprep.subr.mxu0 0.0
      %331 = vmatpush1.msra.mxu0 0.0
      %332 = vmatprep.subr.mxu0 0.0
      %333 = vmatpush1.msra.mxu0 %v309
      %334 = vmatprep.subr.mxu0 0.0
      %335 = vmatpush1.msra.mxu0 %v308
      %336 = vmatprep.subr.mxu0 0.0
      %337 = vmatpush1.msra.mxu0 %v307
      %338 = vmatprep.subr.mxu0 0.0
      %339 = vmatpush1.msra.mxu0 %v306
      %340 = vmatprep.subr.mxu0 0.0
      %341 = vmatpush1.msra.mxu0 %v305
      %342 = vmatprep.subr.mxu0 0.0
      %343 = vmatpush1.msra.mxu0 %v304
      %344 = vmatprep.subr.mxu0 0.0
      %345 = vmatpush1.msra.mxu0 %v303
      %346 = vmatprep.subr.mxu0 0.0
      %347 = vmatpush1.msra.mxu0 %v302
      %348 = vmatprep.subr.mxu0 0.0
      %349 = vmatpush2.msra.mxu0 0.0
      %350 = vmatprep.subr.mxu0 0.0
      %351 = vmatpush2.msra.mxu0 0.0
      %352 = vmatprep.subr.mxu0 0.0
      %353 = vmatpush2.msra.mxu0 0.0
      %354 = vmatprep.subr.mxu0 0.0
      %355 = vmatpush2.msra.mxu0 0.0
      %356 = vmatprep.subr.mxu0 0.0
      %357 = vmatpush2.msra.mxu0 0.0
      %358 = vmatprep.subr.mxu0 0.0
      %359 = vmatpush2.msra.mxu0 0.0
      %360 = vmatprep.subr.mxu0 0.0
      %361 = vmatpush2.msra.mxu0 0.0
      %362 = vmatprep.subr.mxu0 0.0
      %363 = vmatpush2.msra.mxu0 0.0
      %364 = vmatprep.subr.mxu0 0.0
      %365 = vmatpush2.msra.mxu0 0.0
      %366 = vmatprep.subr.mxu0 0.0
      %367 = vmatpush2.msra.mxu0 0.0
      %368 = vmatprep.subr.mxu0 0.0
      %369 = vmatpush2.msra.mxu0 0.0
      %370 = vmatprep.subr.mxu0 0.0
      %371 = vmatpush2.msra.mxu0 0.0
      %372 = vmatprep.subr.mxu0 0.0
      %373 = vmatpush2.msra.mxu0 0.0
      %374 = vmatprep.subr.mxu0 0.0
      %375 = vmatpush2.msra.mxu0 0.0
      %376 = vmatprep.subr.mxu0 0.0
      %377 = vmatpush2.msra.mxu0 0.0
      %378 = vmatprep.subr.mxu0 0.0
      %379 = vmatpush2.msra.mxu0 0.0
      %380 = vmatprep.mubr.f32.mxu0 0.0
      %381 = vmatmul.mubr.f32.gmra.mxu0 %v311
      %v382 = vpop.f32.mrf.mxu0
      %v383 = vadd.f32 0.0, %v382
      %v384 = vpop.f32.mrf.mxu0
      %385 = vmatprep.mubr.f32.mxu0 0.0
      %386 = vmatmul.mubr.f32.gmra.mxu0 %v314
      %v387 = vpop.f32.mrf.mxu0
      %v388 = vadd.f32 0.0, %v387
      %v389 = vpop.f32.mrf.mxu0
      %390 = vdwg.mxu0
      %v392 = vsel %vm286, %v289, 0
      %v395 = vsel %vm286, %v290, 0
      %397 = vmatprep.subr.mxu0 0.0
      %398 = vmatpush1.msra.mxu0 0.0
      %399 = vmatprep.subr.mxu0 0.0
      %400 = vmatpush1.msra.mxu0 0.0
      %401 = vmatprep.subr.mxu0 0.0
      %402 = vmatpush1.msra.mxu0 0.0
      %403 = vmatprep.subr.mxu0 0.0
      %404 = vmatpush1.msra.mxu0 0.0
      %405 = vmatprep.subr.mxu0 0.0
      %406 = vmatpush1.msra.mxu0 0.0
      %407 = vmatprep.subr.mxu0 0.0
      %408 = vmatpush1.msra.mxu0 0.0
      %409 = vmatprep.subr.mxu0 0.0
      %410 = vmatpush1.msra.mxu0 0.0
      %411 = vmatprep.subr.mxu0 0.0
      %412 = vmatpush1.msra.mxu0 0.0
      %413 = vmatprep.subr.mxu0 0.0
      %414 = vmatpush1.msra.mxu0 %v298
      %415 = vmatprep.subr.mxu0 0.0
      %416 = vmatpush1.msra.mxu0 %v297
      %417 = vmatprep.subr.mxu0 0.0
      %418 = vmatpush1.msra.mxu0 %v296
      %419 = vmatprep.subr.mxu0 0.0
      %420 = vmatpush1.msra.mxu0 %v295
      %421 = vmatprep.subr.mxu0 0.0
      %422 = vmatpush1.msra.mxu0 %v294
      %423 = vmatprep.subr.mxu0 0.0
      %424 = vmatpush1.msra.mxu0 %v293
      %425 = vmatprep.subr.mxu0 0.0
      %426 = vmatpush1.msra.mxu0 %v292
      %427 = vmatprep.subr.mxu0 0.0
      %428 = vmatpush1.msra.mxu0 %v291
      %429 = vmatprep.subr.mxu0 0.0
      %430 = vmatpush2.msra.mxu0 0.0
      %431 = vmatprep.subr.mxu0 0.0
      %432 = vmatpush2.msra.mxu0 0.0
      %433 = vmatprep.subr.mxu0 0.0
      %434 = vmatpush2.msra.mxu0 0.0
      %435 = vmatprep.subr.mxu0 0.0
      %436 = vmatpush2.msra.mxu0 0.0
      %437 = vmatprep.subr.mxu0 0.0
      %438 = vmatpush2.msra.mxu0 0.0
      %439 = vmatprep.subr.mxu0 0.0
      %440 = vmatpush2.msra.mxu0 0.0
      %441 = vmatprep.subr.mxu0 0.0
      %442 = vmatpush2.msra.mxu0 0.0
      %443 = vmatprep.subr.mxu0 0.0
      %444 = vmatpush2.msra.mxu0 0.0
      %445 = vmatprep.subr.mxu0 0.0
      %446 = vmatpush2.msra.mxu0 0.0
      %447 = vmatprep.subr.mxu0 0.0
      %448 = vmatpush2.msra.mxu0 0.0
      %449 = vmatprep.subr.mxu0 0.0
      %450 = vmatpush2.msra.mxu0 0.0
      %451 = vmatprep.subr.mxu0 0.0
      %452 = vmatpush2.msra.mxu0 0.0
      %453 = vmatprep.subr.mxu0 0.0
      %454 = vmatpush2.msra.mxu0 0.0
      %455 = vmatprep.subr.mxu0 0.0
      %456 = vmatpush2.msra.mxu0 0.0
      %457 = vmatprep.subr.mxu0 0.0
      %458 = vmatpush2.msra.mxu0 0.0
      %459 = vmatprep.subr.mxu0 0.0
      %460 = vmatpush2.msra.mxu0 0.0
      %461 = vmatprep.mubr.f32.mxu0 0.0
      %462 = vmatmul.mubr.f32.gmra.mxu0 %v392
      %v463 = vpop.f32.mrf.mxu0
      %v464 = vadd.f32 %v383, %v463
      %v465 = vpop.f32.mrf.mxu0
      %466 = vmatprep.mubr.f32.mxu0 0.0
      %467 = vmatmul.mubr.f32.gmra.mxu0 %v395
      %v468 = vpop.f32.mrf.mxu0
      %v469 = vadd.f32 %v388, %v468
      %v470 = vpop.f32.mrf.mxu0
      %471 = vdwg.mxu0
      %v472 = vld [vmem:[#allocation2 + $0x2] sm:$0xff]
      %v473 = vld [vmem:[#allocation2 + $0xa] sm:$0xff]
      %s474 = scalar_lea.vmem %s1, 128
      %v475 = vld [vmem:[%s474] sm:$0xff]
      %v476 = vld [vmem:[%s474 + $0x8] sm:$0xff]
      %v477 = vld [vmem:[%s474 + $0x10] sm:$0xff]
      %v478 = vld [vmem:[%s474 + $0x18] sm:$0xff]
      %v479 = vld [vmem:[%s474 + $0x20] sm:$0xff]
      %v480 = vld [vmem:[%s474 + $0x28] sm:$0xff]
      %v481 = vld [vmem:[%s474 + $0x30] sm:$0xff]
      %v482 = vld [vmem:[%s474 + $0x38] sm:$0xff]
      %v484 = vsel %vm286, %v472, 0
      %v487 = vsel %vm286, %v473, 0
      %489 = vmatprep.subr.mxu0 0.0
      %490 = vmatpush1.msra.mxu0 0.0
      %491 = vmatprep.subr.mxu0 0.0
      %492 = vmatpush1.msra.mxu0 0.0
      %493 = vmatprep.subr.mxu0 0.0
      %494 = vmatpush1.msra.mxu0 0.0
      %495 = vmatprep.subr.mxu0 0.0
      %496 = vmatpush1.msra.mxu0 0.0
      %497 = vmatprep.subr.mxu0 0.0
      %498 = vmatpush1.msra.mxu0 0.0
      %499 = vmatprep.subr.mxu0 0.0
      %500 = vmatpush1.msra.mxu0 0.0
      %501 = vmatprep.subr.mxu0 0.0
      %502 = vmatpush1.msra.mxu0 0.0
      %503 = vmatprep.subr.mxu0 0.0
      %504 = vmatpush1.msra.mxu0 0.0
      %505 = vmatprep.subr.mxu0 0.0
      %506 = vmatpush1.msra.mxu0 %v482
      %507 = vmatprep.subr.mxu0 0.0
      %508 = vmatpush1.msra.mxu0 %v481
      %509 = vmatprep.subr.mxu0 0.0
      %510 = vmatpush1.msra.mxu0 %v480
      %511 = vmatprep.subr.mxu0 0.0
      %512 = vmatpush1.msra.mxu0 %v479
      %513 = vmatprep.subr.mxu0 0.0
      %514 = vmatpush1.msra.mxu0 %v478
      %515 = vmatprep.subr.mxu0 0.0
      %516 = vmatpush1.msra.mxu0 %v477
      %517 = vmatprep.subr.mxu0 0.0
      %518 = vmatpush1.msra.mxu0 %v476
      %519 = vmatprep.subr.mxu0 0.0
      %520 = vmatpush1.msra.mxu0 %v475
      %521 = vmatprep.subr.mxu0 0.0
      %522 = vmatpush2.msra.mxu0 0.0
      %523 = vmatprep.subr.mxu0 0.0
      %524 = vmatpush2.msra.mxu0 0.0
      %525 = vmatprep.subr.mxu0 0.0
      %526 = vmatpush2.msra.mxu0 0.0
      %527 = vmatprep.subr.mxu0 0.0
      %528 = vmatpush2.msra.mxu0 0.0
      %529 = vmatprep.subr.mxu0 0.0
      %530 = vmatpush2.msra.mxu0 0.0
      %531 = vmatprep.subr.mxu0 0.0
      %532 = vmatpush2.msra.mxu0 0.0
      %533 = vmatprep.subr.mxu0 0.0
      %534 = vmatpush2.msra.mxu0 0.0
      %535 = vmatprep.subr.mxu0 0.0
      %536 = vmatpush2.msra.mxu0 0.0
      %537 = vmatprep.subr.mxu0 0.0
      %538 = vmatpush2.msra.mxu0 0.0
      %539 = vmatprep.subr.mxu0 0.0
      %540 = vmatpush2.msra.mxu0 0.0
      %541 = vmatprep.subr.mxu0 0.0
      %542 = vmatpush2.msra.mxu0 0.0
      %543 = vmatprep.subr.mxu0 0.0
      %544 = vmatpush2.msra.mxu0 0.0
      %545 = vmatprep.subr.mxu0 0.0
      %546 = vmatpush2.msra.mxu0 0.0
      %547 = vmatprep.subr.mxu0 0.0
      %548 = vmatpush2.msra.mxu0 0.0
      %549 = vmatprep.subr.mxu0 0.0
      %550 = vmatpush2.msra.mxu0 0.0
      %551 = vmatprep.subr.mxu0 0.0
      %552 = vmatpush2.msra.mxu0 0.0
      %553 = vmatprep.mubr.f32.mxu0 0.0
      %554 = vmatmul.mubr.f32.gmra.mxu0 %v484
      %v555 = vpop.f32.mrf.mxu0
      %v556 = vadd.f32 0.0, %v555
      %v557 = vpop.f32.mrf.mxu0
      %558 = vmatprep.mubr.f32.mxu0 0.0
      %559 = vmatmul.mubr.f32.gmra.mxu0 %v487
      %v560 = vpop.f32.mrf.mxu0
      %v561 = vadd.f32 0.0, %v560
      %v562 = vpop.f32.mrf.mxu0
      %563 = vdwg.mxu0
      %v564 = vadd.f32 %v464, %v556
      %v565 = vadd.f32 %v469, %v561
      %v566 = vld [vmem:[#allocation2 + $0x3] sm:$0xff]
      %v567 = vld [vmem:[#allocation2 + $0xb] sm:$0xff]
      %s568 = scalar_lea.vmem %s1, 192
      %v569 = vld [vmem:[%s568] sm:$0xff]
      %v570 = vld [vmem:[%s568 + $0x8] sm:$0xff]
      %v571 = vld [vmem:[%s568 + $0x10] sm:$0xff]
      %v572 = vld [vmem:[%s568 + $0x18] sm:$0xff]
      %v573 = vld [vmem:[%s568 + $0x20] sm:$0xff]
      %v574 = vld [vmem:[%s568 + $0x28] sm:$0xff]
      %v575 = vld [vmem:[%s568 + $0x30] sm:$0xff]
      %v576 = vld [vmem:[%s568 + $0x38] sm:$0xff]
      %v578 = vsel %vm286, %v566, 0
      %v581 = vsel %vm286, %v567, 0
      %583 = vmatprep.subr.mxu0 0.0
      %584 = vmatpush1.msra.mxu0 0.0
      %585 = vmatprep.subr.mxu0 0.0
      %586 = vmatpush1.msra.mxu0 0.0
      %587 = vmatprep.subr.mxu0 0.0
      %588 = vmatpush1.msra.mxu0 0.0
      %589 = vmatprep.subr.mxu0 0.0
      %590 = vmatpush1.msra.mxu0 0.0
      %591 = vmatprep.subr.mxu0 0.0
      %592 = vmatpush1.msra.mxu0 0.0
      %593 = vmatprep.subr.mxu0 0.0
      %594 = vmatpush1.msra.mxu0 0.0
      %595 = vmatprep.subr.mxu0 0.0
      %596 = vmatpush1.msra.mxu0 0.0
      %597 = vmatprep.subr.mxu0 0.0
      %598 = vmatpush1.msra.mxu0 0.0
      %599 = vmatprep.subr.mxu0 0.0
      %600 = vmatpush1.msra.mxu0 %v576
      %601 = vmatprep.subr.mxu0 0.0
      %602 = vmatpush1.msra.mxu0 %v575
      %603 = vmatprep.subr.mxu0 0.0
      %604 = vmatpush1.msra.mxu0 %v574
      %605 = vmatprep.subr.mxu0 0.0
      %606 = vmatpush1.msra.mxu0 %v573
      %607 = vmatprep.subr.mxu0 0.0
      %608 = vmatpush1.msra.mxu0 %v572
      %609 = vmatprep.subr.mxu0 0.0
      %610 = vmatpush1.msra.mxu0 %v571
      %611 = vmatprep.subr.mxu0 0.0
      %612 = vmatpush1.msra.mxu0 %v570
      %613 = vmatprep.subr.mxu0 0.0
      %614 = vmatpush1.msra.mxu0 %v569
      %615 = vmatprep.subr.mxu0 0.0
      %616 = vmatpush2.msra.mxu0 0.0
      %617 = vmatprep.subr.mxu0 0.0
      %618 = vmatpush2.msra.mxu0 0.0
      %619 = vmatprep.subr.mxu0 0.0
      %620 = vmatpush2.msra.mxu0 0.0
      %621 = vmatprep.subr.mxu0 0.0
      %622 = vmatpush2.msra.mxu0 0.0
      %623 = vmatprep.subr.mxu0 0.0
      %624 = vmatpush2.msra.mxu0 0.0
      %625 = vmatprep.subr.mxu0 0.0
      %626 = vmatpush2.msra.mxu0 0.0
      %627 = vmatprep.subr.mxu0 0.0
      %628 = vmatpush2.msra.mxu0 0.0
      %629 = vmatprep.subr.mxu0 0.0
      %630 = vmatpush2.msra.mxu0 0.0
      %631 = vmatprep.subr.mxu0 0.0
      %632 = vmatpush2.msra.mxu0 0.0
      %633 = vmatprep.subr.mxu0 0.0
      %634 = vmatpush2.msra.mxu0 0.0
      %635 = vmatprep.subr.mxu0 0.0
      %636 = vmatpush2.msra.mxu0 0.0
      %637 = vmatprep.subr.mxu0 0.0
      %638 = vmatpush2.msra.mxu0 0.0
      %639 = vmatprep.subr.mxu0 0.0
      %640 = vmatpush2.msra.mxu0 0.0
      %641 = vmatprep.subr.mxu0 0.0
      %642 = vmatpush2.msra.mxu0 0.0
      %643 = vmatprep.subr.mxu0 0.0
      %644 = vmatpush2.msra.mxu0 0.0
      %645 = vmatprep.subr.mxu0 0.0
      %646 = vmatpush2.msra.mxu0 0.0
      %647 = vmatprep.mubr.f32.mxu0 0.0
      %648 = vmatmul.mubr.f32.gmra.mxu0 %v578
      %v649 = vpop.f32.mrf.mxu0
      %v650 = vadd.f32 0.0, %v649
      %v651 = vpop.f32.mrf.mxu0
      %652 = vmatprep.mubr.f32.mxu0 0.0
      %653 = vmatmul.mubr.f32.gmra.mxu0 %v581
      %v654 = vpop.f32.mrf.mxu0
      %v655 = vadd.f32 0.0, %v654
      %v656 = vpop.f32.mrf.mxu0
      %657 = vdwg.mxu0
      %v658 = vadd.f32 %v564, %v650
      %v659 = vadd.f32 %v565, %v655
      %v660 = vld [vmem:[#allocation2 + $0x4] sm:$0xff]
      %v661 = vld [vmem:[#allocation2 + $0xc] sm:$0xff]
      %s662 = scalar_lea.vmem %s1, 256
      %v663 = vld [vmem:[%s662] sm:$0xff]
      %v664 = vld [vmem:[%s662 + $0x8] sm:$0xff]
      %v665 = vld [vmem:[%s662 + $0x10] sm:$0xff]
      %v666 = vld [vmem:[%s662 + $0x18] sm:$0xff]
      %v667 = vld [vmem:[%s662 + $0x20] sm:$0xff]
      %v668 = vld [vmem:[%s662 + $0x28] sm:$0xff]
      %v669 = vld [vmem:[%s662 + $0x30] sm:$0xff]
      %v670 = vld [vmem:[%s662 + $0x38] sm:$0xff]
      %v672 = vsel %vm286, %v660, 0
      %v675 = vsel %vm286, %v661, 0
      %677 = vmatprep.subr.mxu0 0.0
      %678 = vmatpush1.msra.mxu0 0.0
      %679 = vmatprep.subr.mxu0 0.0
      %680 = vmatpush1.msra.mxu0 0.0
      %681 = vmatprep.subr.mxu0 0.0
      %682 = vmatpush1.msra.mxu0 0.0
      %683 = vmatprep.subr.mxu0 0.0
      %684 = vmatpush1.msra.mxu0 0.0
      %685 = vmatprep.subr.mxu0 0.0
      %686 = vmatpush1.msra.mxu0 0.0
      %687 = vmatprep.subr.mxu0 0.0
      %688 = vmatpush1.msra.mxu0 0.0
      %689 = vmatprep.subr.mxu0 0.0
      %690 = vmatpush1.msra.mxu0 0.0
      %691 = vmatprep.subr.mxu0 0.0
      %692 = vmatpush1.msra.mxu0 0.0
      %693 = vmatprep.subr.mxu0 0.0
      %694 = vmatpush1.msra.mxu0 %v670
      %695 = vmatprep.subr.mxu0 0.0
      %696 = vmatpush1.msra.mxu0 %v669
      %697 = vmatprep.subr.mxu0 0.0
      %698 = vmatpush1.msra.mxu0 %v668
      %699 = vmatprep.subr.mxu0 0.0
      %700 = vmatpush1.msra.mxu0 %v667
      %701 = vmatprep.subr.mxu0 0.0
      %702 = vmatpush1.msra.mxu0 %v666
      %703 = vmatprep.subr.mxu0 0.0
      %704 = vmatpush1.msra.mxu0 %v665
      %705 = vmatprep.subr.mxu0 0.0
      %706 = vmatpush1.msra.mxu0 %v664
      %707 = vmatprep.subr.mxu0 0.0
      %708 = vmatpush1.msra.mxu0 %v663
      %709 = vmatprep.subr.mxu0 0.0
      %710 = vmatpush2.msra.mxu0 0.0
      %711 = vmatprep.subr.mxu0 0.0
      %712 = vmatpush2.msra.mxu0 0.0
      %713 = vmatprep.subr.mxu0 0.0
      %714 = vmatpush2.msra.mxu0 0.0
      %715 = vmatprep.subr.mxu0 0.0
      %716 = vmatpush2.msra.mxu0 0.0
      %717 = vmatprep.subr.mxu0 0.0
      %718 = vmatpush2.msra.mxu0 0.0
      %719 = vmatprep.subr.mxu0 0.0
      %720 = vmatpush2.msra.mxu0 0.0
      %721 = vmatprep.subr.mxu0 0.0
      %722 = vmatpush2.msra.mxu0 0.0
      %723 = vmatprep.subr.mxu0 0.0
      %724 = vmatpush2.msra.mxu0 0.0
      %725 = vmatprep.subr.mxu0 0.0
      %726 = vmatpush2.msra.mxu0 0.0
      %727 = vmatprep.subr.mxu0 0.0
      %728 = vmatpush2.msra.mxu0 0.0
      %729 = vmatprep.subr.mxu0 0.0
      %730 = vmatpush2.msra.mxu0 0.0
      %731 = vmatprep.subr.mxu0 0.0
      %732 = vmatpush2.msra.mxu0 0.0
      %733 = vmatprep.subr.mxu0 0.0
      %734 = vmatpush2.msra.mxu0 0.0
      %735 = vmatprep.subr.mxu0 0.0
      %736 = vmatpush2.msra.mxu0 0.0
      %737 = vmatprep.subr.mxu0 0.0
      %738 = vmatpush2.msra.mxu0 0.0
      %739 = vmatprep.subr.mxu0 0.0
      %740 = vmatpush2.msra.mxu0 0.0
      %741 = vmatprep.mubr.f32.mxu0 0.0
      %742 = vmatmul.mubr.f32.gmra.mxu0 %v672
      %v743 = vpop.f32.mrf.mxu0
      %v744 = vadd.f32 0.0, %v743
      %v745 = vpop.f32.mrf.mxu0
      %746 = vmatprep.mubr.f32.mxu0 0.0
      %747 = vmatmul.mubr.f32.gmra.mxu0 %v675
      %v748 = vpop.f32.mrf.mxu0
      %v749 = vadd.f32 0.0, %v748
      %v750 = vpop.f32.mrf.mxu0
      %751 = vdwg.mxu0
      %v752 = vadd.f32 %v658, %v744
      %v753 = vadd.f32 %v659, %v749
      %v754 = vld [vmem:[%s2] sm:$0x1]
      %v756 = vlaneseq
      %v757 = vshrl.u32 %v756, 7
      %v758 = vsub.s32 0, %v757
      %v759 = vrot.slane %v754, %v758
      %v761 = vmul.f32 %v752, %v759
      %v762 = vmul.f32 %v753, %v759
      %v763 = vld [vmem:[%s3] sm:$0x1]
      %v765 = vlaneseq
      %v766 = vshrl.u32 %v765, 7
      %v767 = vsub.s32 0, %v766
      %v768 = vrot.slane %v763, %v767
      %v770 = vadd.f32 %v761, %v768
      %v771 = vadd.f32 %v762, %v768
      %v772 = vmax.f32 %v770, 0.0
      %v773 = vmax.f32 %v771, 0.0
      %774 = vst [vmem:[#allocation3 + $0x2] sm:$0xff] %v772
      %775 = vst [vmem:[#allocation3 + $0xa] sm:$0xff] %v773
      %v776 = vld [vmem:[#allocation3] sm:$0xff]
      %v777 = vld [vmem:[#allocation3 + $0x8] sm:$0xff]
      %v778 = vld [vmem:[%s4] sm:$0xff]
      %v779 = vld [vmem:[%s4 + $0x8] sm:$0xff]
      %v780 = vld [vmem:[%s4 + $0x10] sm:$0xff]
      %v781 = vld [vmem:[%s4 + $0x18] sm:$0xff]
      %v782 = vld [vmem:[%s4 + $0x20] sm:$0xff]
      %v783 = vld [vmem:[%s4 + $0x28] sm:$0xff]
      %v784 = vld [vmem:[%s4 + $0x30] sm:$0xff]
      %v785 = vld [vmem:[%s4 + $0x38] sm:$0xff]
      %v786 = vld [vmem:[%s4 + $0x40] sm:$0xff]
      %v787 = vld [vmem:[%s4 + $0x48] sm:$0xff]
      %v788 = vld [vmem:[%s4 + $0x50] sm:$0xff]
      %v789 = vld [vmem:[%s4 + $0x58] sm:$0xff]
      %v790 = vld [vmem:[%s4 + $0x60] sm:$0xff]
      %v791 = vld [vmem:[%s4 + $0x68] sm:$0xff]
      %v792 = vld [vmem:[%s4 + $0x70] sm:$0xff]
      %v793 = vld [vmem:[%s4 + $0x78] sm:$0xff]
      %v794 = vld [vmem:[#allocation3 + $0x1] sm:$0xff]
      %v795 = vld [vmem:[#allocation3 + $0x9] sm:$0xff]
      %s796 = scalar_lea.vmem %s4, 128
      %v797 = vld [vmem:[%s796] sm:$0xff]
      %v798 = vld [vmem:[%s796 + $0x8] sm:$0xff]
      %v799 = vld [vmem:[%s796 + $0x10] sm:$0xff]
      %v800 = vld [vmem:[%s796 + $0x18] sm:$0xff]
      %v801 = vld [vmem:[%s796 + $0x20] sm:$0xff]
      %v802 = vld [vmem:[%s796 + $0x28] sm:$0xff]
      %v803 = vld [vmem:[%s796 + $0x30] sm:$0xff]
      %v804 = vld [vmem:[%s796 + $0x38] sm:$0xff]
      %v805 = vld [vmem:[%s796 + $0x40] sm:$0xff]
      %v806 = vld [vmem:[%s796 + $0x48] sm:$0xff]
      %v807 = vld [vmem:[%s796 + $0x50] sm:$0xff]
      %v808 = vld [vmem:[%s796 + $0x58] sm:$0xff]
      %v809 = vld [vmem:[%s796 + $0x60] sm:$0xff]
      %v810 = vld [vmem:[%s796 + $0x68] sm:$0xff]
      %v811 = vld [vmem:[%s796 + $0x70] sm:$0xff]
      %v812 = vld [vmem:[%s796 + $0x78] sm:$0xff]
      %813 = vmatprep.subr.mxu0 0.0
      %814 = vmatpush1.msra.mxu0 %v812
      %815 = vmatprep.subr.mxu0 0.0
      %816 = vmatpush1.msra.mxu0 %v811
      %817 = vmatprep.subr.mxu0 0.0
      %818 = vmatpush1.msra.mxu0 %v810
      %819 = vmatprep.subr.mxu0 0.0
      %820 = vmatpush1.msra.mxu0 %v809
      %821 = vmatprep.subr.mxu0 0.0
      %822 = vmatpush1.msra.mxu0 %v808
      %823 = vmatprep.subr.mxu0 0.0
      %824 = vmatpush1.msra.mxu0 %v807
      %825 = vmatprep.subr.mxu0 0.0
      %826 = vmatpush1.msra.mxu0 %v806
      %827 = vmatprep.subr.mxu0 0.0
      %828 = vmatpush1.msra.mxu0 %v805
      %829 = vmatprep.subr.mxu0 0.0
      %830 = vmatpush1.msra.mxu0 %v804
      %831 = vmatprep.subr.mxu0 0.0
      %832 = vmatpush1.msra.mxu0 %v803
      %833 = vmatprep.subr.mxu0 0.0
      %834 = vmatpush1.msra.mxu0 %v802
      %835 = vmatprep.subr.mxu0 0.0
      %836 = vmatpush1.msra.mxu0 %v801
      %837 = vmatprep.subr.mxu0 0.0
      %838 = vmatpush1.msra.mxu0 %v800
      %839 = vmatprep.subr.mxu0 0.0
      %840 = vmatpush1.msra.mxu0 %v799
      %841 = vmatprep.subr.mxu0 0.0
      %842 = vmatpush1.msra.mxu0 %v798
      %843 = vmatprep.subr.mxu0 0.0
      %844 = vmatpush1.msra.mxu0 %v797
      %845 = vmatprep.subr.mxu0 0.0
      %846 = vmatpush2.msra.mxu0 0.0
      %847 = vmatprep.subr.mxu0 0.0
      %848 = vmatpush2.msra.mxu0 0.0
      %849 = vmatprep.subr.mxu0 0.0
      %850 = vmatpush2.msra.mxu0 0.0
      %851 = vmatprep.subr.mxu0 0.0
      %852 = vmatpush2.msra.mxu0 0.0
      %853 = vmatprep.subr.mxu0 0.0
      %854 = vmatpush2.msra.mxu0 0.0
      %855 = vmatprep.subr.mxu0 0.0
      %856 = vmatpush2.msra.mxu0 0.0
      %857 = vmatprep.subr.mxu0 0.0
      %858 = vmatpush2.msra.mxu0 0.0
      %859 = vmatprep.subr.mxu0 0.0
      %860 = vmatpush2.msra.mxu0 0.0
      %861 = vmatprep.subr.mxu0 0.0
      %862 = vmatpush2.msra.mxu0 0.0
      %863 = vmatprep.subr.mxu0 0.0
      %864 = vmatpush2.msra.mxu0 0.0
      %865 = vmatprep.subr.mxu0 0.0
      %866 = vmatpush2.msra.mxu0 0.0
      %867 = vmatprep.subr.mxu0 0.0
      %868 = vmatpush2.msra.mxu0 0.0
      %869 = vmatprep.subr.mxu0 0.0
      %870 = vmatpush2.msra.mxu0 0.0
      %871 = vmatprep.subr.mxu0 0.0
      %872 = vmatpush2.msra.mxu0 0.0
      %873 = vmatprep.subr.mxu0 0.0
      %874 = vmatpush2.msra.mxu0 0.0
      %875 = vmatprep.subr.mxu0 0.0
      %876 = vmatpush2.msra.mxu0 0.0
      %877 = vmatprep.mubr.f32.mxu0 0.0
      %878 = vmatmul.mubr.f32.gmra.mxu0 %v794
      %v879 = vpop.f32.mrf.mxu0
      %v880 = vadd.f32 0.0, %v879
      %v881 = vpop.f32.mrf.mxu0
      %882 = vmatprep.mubr.f32.mxu0 0.0
      %883 = vmatmul.mubr.f32.gmra.mxu0 %v795
      %v884 = vpop.f32.mrf.mxu0
      %v885 = vadd.f32 0.0, %v884
      %v886 = vpop.f32.mrf.mxu0
      %887 = vdwg.mxu0
      %888 = vmatprep.subr.mxu0 0.0
      %889 = vmatpush1.msra.mxu0 %v793
      %890 = vmatprep.subr.mxu0 0.0
      %891 = vmatpush1.msra.mxu0 %v792
      %892 = vmatprep.subr.mxu0 0.0
      %893 = vmatpush1.msra.mxu0 %v791
      %894 = vmatprep.subr.mxu0 0.0
      %895 = vmatpush1.msra.mxu0 %v790
      %896 = vmatprep.subr.mxu0 0.0
      %897 = vmatpush1.msra.mxu0 %v789
      %898 = vmatprep.subr.mxu0 0.0
      %899 = vmatpush1.msra.mxu0 %v788
      %900 = vmatprep.subr.mxu0 0.0
      %901 = vmatpush1.msra.mxu0 %v787
      %902 = vmatprep.subr.mxu0 0.0
      %903 = vmatpush1.msra.mxu0 %v786
      %904 = vmatprep.subr.mxu0 0.0
      %905 = vmatpush1.msra.mxu0 %v785
      %906 = vmatprep.subr.mxu0 0.0
      %907 = vmatpush1.msra.mxu0 %v784
      %908 = vmatprep.subr.mxu0 0.0
      %909 = vmatpush1.msra.mxu0 %v783
      %910 = vmatprep.subr.mxu0 0.0
      %911 = vmatpush1.msra.mxu0 %v782
      %912 = vmatprep.subr.mxu0 0.0
      %913 = vmatpush1.msra.mxu0 %v781
      %914 = vmatprep.subr.mxu0 0.0
      %915 = vmatpush1.msra.mxu0 %v780
      %916 = vmatprep.subr.mxu0 0.0
      %917 = vmatpush1.msra.mxu0 %v779
      %918 = vmatprep.subr.mxu0 0.0
      %919 = vmatpush1.msra.mxu0 %v778
      %920 = vmatprep.subr.mxu0 0.0
      %921 = vmatpush2.msra.mxu0 0.0
      %922 = vmatprep.subr.mxu0 0.0
      %923 = vmatpush2.msra.mxu0 0.0
      %924 = vmatprep.subr.mxu0 0.0
      %925 = vmatpush2.msra.mxu0 0.0
      %926 = vmatprep.subr.mxu0 0.0
      %927 = vmatpush2.msra.mxu0 0.0
      %928 = vmatprep.subr.mxu0 0.0
      %929 = vmatpush2.msra.mxu0 0.0
      %930 = vmatprep.subr.mxu0 0.0
      %931 = vmatpush2.msra.mxu0 0.0
      %932 = vmatprep.subr.mxu0 0.0
      %933 = vmatpush2.msra.mxu0 0.0
      %934 = vmatprep.subr.mxu0 0.0
      %935 = vmatpush2.msra.mxu0 0.0
      %936 = vmatprep.subr.mxu0 0.0
      %937 = vmatpush2.msra.mxu0 0.0
      %938 = vmatprep.subr.mxu0 0.0
      %939 = vmatpush2.msra.mxu0 0.0
      %940 = vmatprep.subr.mxu0 0.0
      %941 = vmatpush2.msra.mxu0 0.0
      %942 = vmatprep.subr.mxu0 0.0
      %943 = vmatpush2.msra.mxu0 0.0
      %944 = vmatprep.subr.mxu0 0.0
      %945 = vmatpush2.msra.mxu0 0.0
      %946 = vmatprep.subr.mxu0 0.0
      %947 = vmatpush2.msra.mxu0 0.0
      %948 = vmatprep.subr.mxu0 0.0
      %949 = vmatpush2.msra.mxu0 0.0
      %950 = vmatprep.subr.mxu0 0.0
      %951 = vmatpush2.msra.mxu0 0.0
      %952 = vmatprep.mubr.f32.mxu0 0.0
      %953 = vmatmul.mubr.f32.gmra.mxu0 %v776
      %v954 = vpop.f32.mrf.mxu0
      %v955 = vadd.f32 %v880, %v954
      %v956 = vpop.f32.mrf.mxu0
      %957 = vmatprep.mubr.f32.mxu0 0.0
      %958 = vmatmul.mubr.f32.gmra.mxu0 %v777
      %v959 = vpop.f32.mrf.mxu0
      %v960 = vadd.f32 %v885, %v959
      %v961 = vpop.f32.mrf.mxu0
      %962 = vdwg.mxu0
      %v963 = vld [vmem:[#allocation3 + $0x2] sm:$0xff]
      %v964 = vld [vmem:[#allocation3 + $0xa] sm:$0xff]
      %s965 = scalar_lea.vmem %s4, 256
      %v966 = vld [vmem:[%s965] sm:$0xff]
      %v967 = vld [vmem:[%s965 + $0x8] sm:$0xff]
      %v968 = vld [vmem:[%s965 + $0x10] sm:$0xff]
      %v969 = vld [vmem:[%s965 + $0x18] sm:$0xff]
      %v970 = vld [vmem:[%s965 + $0x20] sm:$0xff]
      %v971 = vld [vmem:[%s965 + $0x28] sm:$0xff]
      %v972 = vld [vmem:[%s965 + $0x30] sm:$0xff]
      %v973 = vld [vmem:[%s965 + $0x38] sm:$0xff]
      %v974 = vld [vmem:[%s965 + $0x40] sm:$0xff]
      %v975 = vld [vmem:[%s965 + $0x48] sm:$0xff]
      %v976 = vld [vmem:[%s965 + $0x50] sm:$0xff]
      %v977 = vld [vmem:[%s965 + $0x58] sm:$0xff]
      %v978 = vld [vmem:[%s965 + $0x60] sm:$0xff]
      %v979 = vld [vmem:[%s965 + $0x68] sm:$0xff]
      %v980 = vld [vmem:[%s965 + $0x70] sm:$0xff]
      %v981 = vld [vmem:[%s965 + $0x78] sm:$0xff]
      %982 = vmatprep.subr.mxu0 0.0
      %983 = vmatpush1.msra.mxu0 %v981
      %984 = vmatprep.subr.mxu0 0.0
      %985 = vmatpush1.msra.mxu0 %v980
      %986 = vmatprep.subr.mxu0 0.0
      %987 = vmatpush1.msra.mxu0 %v979
      %988 = vmatprep.subr.mxu0 0.0
      %989 = vmatpush1.msra.mxu0 %v978
      %990 = vmatprep.subr.mxu0 0.0
      %991 = vmatpush1.msra.mxu0 %v977
      %992 = vmatprep.subr.mxu0 0.0
      %993 = vmatpush1.msra.mxu0 %v976
      %994 = vmatprep.subr.mxu0 0.0
      %995 = vmatpush1.msra.mxu0 %v975
      %996 = vmatprep.subr.mxu0 0.0
      %997 = vmatpush1.msra.mxu0 %v974
      %998 = vmatprep.subr.mxu0 0.0
      %999 = vmatpush1.msra.mxu0 %v973
      %1000 = vmatprep.subr.mxu0 0.0
      %1001 = vmatpush1.msra.mxu0 %v972
      %1002 = vmatprep.subr.mxu0 0.0
      %1003 = vmatpush1.msra.mxu0 %v971
      %1004 = vmatprep.subr.mxu0 0.0
      %1005 = vmatpush1.msra.mxu0 %v970
      %1006 = vmatprep.subr.mxu0 0.0
      %1007 = vmatpush1.msra.mxu0 %v969
      %1008 = vmatprep.subr.mxu0 0.0
      %1009 = vmatpush1.msra.mxu0 %v968
      %1010 = vmatprep.subr.mxu0 0.0
      %1011 = vmatpush1.msra.mxu0 %v967
      %1012 = vmatprep.subr.mxu0 0.0
      %1013 = vmatpush1.msra.mxu0 %v966
      %1014 = vmatprep.subr.mxu0 0.0
      %1015 = vmatpush2.msra.mxu0 0.0
      %1016 = vmatprep.subr.mxu0 0.0
      %1017 = vmatpush2.msra.mxu0 0.0
      %1018 = vmatprep.subr.mxu0 0.0
      %1019 = vmatpush2.msra.mxu0 0.0
      %1020 = vmatprep.subr.mxu0 0.0
      %1021 = vmatpush2.msra.mxu0 0.0
      %1022 = vmatprep.subr.mxu0 0.0
      %1023 = vmatpush2.msra.mxu0 0.0
      %1024 = vmatprep.subr.mxu0 0.0
      %1025 = vmatpush2.msra.mxu0 0.0
      %1026 = vmatprep.subr.mxu0 0.0
      %1027 = vmatpush2.msra.mxu0 0.0
      %1028 = vmatprep.subr.mxu0 0.0
      %1029 = vmatpush2.msra.mxu0 0.0
      %1030 = vmatprep.subr.mxu0 0.0
      %1031 = vmatpush2.msra.mxu0 0.0
      %1032 = vmatprep.subr.mxu0 0.0
      %1033 = vmatpush2.msra.mxu0 0.0
      %1034 = vmatprep.subr.mxu0 0.0
      %1035 = vmatpush2.msra.mxu0 0.0
      %1036 = vmatprep.subr.mxu0 0.0
      %1037 = vmatpush2.msra.mxu0 0.0
      %1038 = vmatprep.subr.mxu0 0.0
      %1039 = vmatpush2.msra.mxu0 0.0
      %1040 = vmatprep.subr.mxu0 0.0
      %1041 = vmatpush2.msra.mxu0 0.0
      %1042 = vmatprep.subr.mxu0 0.0
      %1043 = vmatpush2.msra.mxu0 0.0
      %1044 = vmatprep.subr.mxu0 0.0
      %1045 = vmatpush2.msra.mxu0 0.0
      %1046 = vmatprep.mubr.f32.mxu0 0.0
      %1047 = vmatmul.mubr.f32.gmra.mxu0 %v963
      %v1048 = vpop.f32.mrf.mxu0
      %v1049 = vadd.f32 0.0, %v1048
      %v1050 = vpop.f32.mrf.mxu0
      %1051 = vmatprep.mubr.f32.mxu0 0.0
      %1052 = vmatmul.mubr.f32.gmra.mxu0 %v964
      %v1053 = vpop.f32.mrf.mxu0
      %v1054 = vadd.f32 0.0, %v1053
      %v1055 = vpop.f32.mrf.mxu0
      %1056 = vdwg.mxu0
      %v1057 = vadd.f32 %v955, %v1049
      %v1058 = vadd.f32 %v960, %v1054
      %v1059 = vld [vmem:[#allocation3 + $0x3] sm:$0xff]
      %v1060 = vld [vmem:[#allocation3 + $0xb] sm:$0xff]
      %s1061 = scalar_lea.vmem %s4, 384
      %v1062 = vld [vmem:[%s1061] sm:$0xff]
      %v1063 = vld [vmem:[%s1061 + $0x8] sm:$0xff]
      %v1064 = vld [vmem:[%s1061 + $0x10] sm:$0xff]
      %v1065 = vld [vmem:[%s1061 + $0x18] sm:$0xff]
      %v1066 = vld [vmem:[%s1061 + $0x20] sm:$0xff]
      %v1067 = vld [vmem:[%s1061 + $0x28] sm:$0xff]
      %v1068 = vld [vmem:[%s1061 + $0x30] sm:$0xff]
      %v1069 = vld [vmem:[%s1061 + $0x38] sm:$0xff]
      %v1070 = vld [vmem:[%s1061 + $0x40] sm:$0xff]
      %v1071 = vld [vmem:[%s1061 + $0x48] sm:$0xff]
      %v1072 = vld [vmem:[%s1061 + $0x50] sm:$0xff]
      %v1073 = vld [vmem:[%s1061 + $0x58] sm:$0xff]
      %v1074 = vld [vmem:[%s1061 + $0x60] sm:$0xff]
      %v1075 = vld [vmem:[%s1061 + $0x68] sm:$0xff]
      %v1076 = vld [vmem:[%s1061 + $0x70] sm:$0xff]
      %v1077 = vld [vmem:[%s1061 + $0x78] sm:$0xff]
      %1078 = vmatprep.subr.mxu0 0.0
      %1079 = vmatpush1.msra.mxu0 %v1077
      %1080 = vmatprep.subr.mxu0 0.0
      %1081 = vmatpush1.msra.mxu0 %v1076
      %1082 = vmatprep.subr.mxu0 0.0
      %1083 = vmatpush1.msra.mxu0 %v1075
      %1084 = vmatprep.subr.mxu0 0.0
      %1085 = vmatpush1.msra.mxu0 %v1074
      %1086 = vmatprep.subr.mxu0 0.0
      %1087 = vmatpush1.msra.mxu0 %v1073
      %1088 = vmatprep.subr.mxu0 0.0
      %1089 = vmatpush1.msra.mxu0 %v1072
      %1090 = vmatprep.subr.mxu0 0.0
      %1091 = vmatpush1.msra.mxu0 %v1071
      %1092 = vmatprep.subr.mxu0 0.0
      %1093 = vmatpush1.msra.mxu0 %v1070
      %1094 = vmatprep.subr.mxu0 0.0
      %1095 = vmatpush1.msra.mxu0 %v1069
      %1096 = vmatprep.subr.mxu0 0.0
      %1097 = vmatpush1.msra.mxu0 %v1068
      %1098 = vmatprep.subr.mxu0 0.0
      %1099 = vmatpush1.msra.mxu0 %v1067
      %1100 = vmatprep.subr.mxu0 0.0
      %1101 = vmatpush1.msra.mxu0 %v1066
      %1102 = vmatprep.subr.mxu0 0.0
      %1103 = vmatpush1.msra.mxu0 %v1065
      %1104 = vmatprep.subr.mxu0 0.0
      %1105 = vmatpush1.msra.mxu0 %v1064
      %1106 = vmatprep.subr.mxu0 0.0
      %1107 = vmatpush1.msra.mxu0 %v1063
      %1108 = vmatprep.subr.mxu0 0.0
      %1109 = vmatpush1.msra.mxu0 %v1062
      %1110 = vmatprep.subr.mxu0 0.0
      %1111 = vmatpush2.msra.mxu0 0.0
      %1112 = vmatprep.subr.mxu0 0.0
      %1113 = vmatpush2.msra.mxu0 0.0
      %1114 = vmatprep.subr.mxu0 0.0
      %1115 = vmatpush2.msra.mxu0 0.0
      %1116 = vmatprep.subr.mxu0 0.0
      %1117 = vmatpush2.msra.mxu0 0.0
      %1118 = vmatprep.subr.mxu0 0.0
      %1119 = vmatpush2.msra.mxu0 0.0
      %1120 = vmatprep.subr.mxu0 0.0
      %1121 = vmatpush2.msra.mxu0 0.0
      %1122 = vmatprep.subr.mxu0 0.0
      %1123 = vmatpush2.msra.mxu0 0.0
      %1124 = vmatprep.subr.mxu0 0.0
      %1125 = vmatpush2.msra.mxu0 0.0
      %1126 = vmatprep.subr.mxu0 0.0
      %1127 = vmatpush2.msra.mxu0 0.0
      %1128 = vmatprep.subr.mxu0 0.0
      %1129 = vmatpush2.msra.mxu0 0.0
      %1130 = vmatprep.subr.mxu0 0.0
      %1131 = vmatpush2.msra.mxu0 0.0
      %1132 = vmatprep.subr.mxu0 0.0
      %1133 = vmatpush2.msra.mxu0 0.0
      %1134 = vmatprep.subr.mxu0 0.0
      %1135 = vmatpush2.msra.mxu0 0.0
      %1136 = vmatprep.subr.mxu0 0.0
      %1137 = vmatpush2.msra.mxu0 0.0
      %1138 = vmatprep.subr.mxu0 0.0
      %1139 = vmatpush2.msra.mxu0 0.0
      %1140 = vmatprep.subr.mxu0 0.0
      %1141 = vmatpush2.msra.mxu0 0.0
      %1142 = vmatprep.mubr.f32.mxu0 0.0
      %1143 = vmatmul.mubr.f32.gmra.mxu0 %v1059
      %v1144 = vpop.f32.mrf.mxu0
      %v1145 = vadd.f32 0.0, %v1144
      %v1146 = vpop.f32.mrf.mxu0
      %1147 = vmatprep.mubr.f32.mxu0 0.0
      %1148 = vmatmul.mubr.f32.gmra.mxu0 %v1060
      %v1149 = vpop.f32.mrf.mxu0
      %v1150 = vadd.f32 0.0, %v1149
      %v1151 = vpop.f32.mrf.mxu0
      %1152 = vdwg.mxu0
      %v1153 = vadd.f32 %v1057, %v1145
      %v1154 = vadd.f32 %v1058, %v1150
      %v1155 = vld [vmem:[#allocation3 + $0x4] sm:$0xff]
      %v1156 = vld [vmem:[#allocation3 + $0xc] sm:$0xff]
      %s1157 = scalar_lea.vmem %s4, 512
      %v1158 = vld [vmem:[%s1157] sm:$0xff]
      %v1159 = vld [vmem:[%s1157 + $0x8] sm:$0xff]
      %v1160 = vld [vmem:[%s1157 + $0x10] sm:$0xff]
      %v1161 = vld [vmem:[%s1157 + $0x18] sm:$0xff]
      %v1162 = vld [vmem:[%s1157 + $0x20] sm:$0xff]
      %v1163 = vld [vmem:[%s1157 + $0x28] sm:$0xff]
      %v1164 = vld [vmem:[%s1157 + $0x30] sm:$0xff]
      %v1165 = vld [vmem:[%s1157 + $0x38] sm:$0xff]
      %v1166 = vld [vmem:[%s1157 + $0x40] sm:$0xff]
      %v1167 = vld [vmem:[%s1157 + $0x48] sm:$0xff]
      %v1168 = vld [vmem:[%s1157 + $0x50] sm:$0xff]
      %v1169 = vld [vmem:[%s1157 + $0x58] sm:$0xff]
      %v1170 = vld [vmem:[%s1157 + $0x60] sm:$0xff]
      %v1171 = vld [vmem:[%s1157 + $0x68] sm:$0xff]
      %v1172 = vld [vmem:[%s1157 + $0x70] sm:$0xff]
      %v1173 = vld [vmem:[%s1157 + $0x78] sm:$0xff]
      %1174 = vmatprep.subr.mxu0 0.0
      %1175 = vmatpush1.msra.mxu0 %v1173
      %1176 = vmatprep.subr.mxu0 0.0
      %1177 = vmatpush1.msra.mxu0 %v1172
      %1178 = vmatprep.subr.mxu0 0.0
      %1179 = vmatpush1.msra.mxu0 %v1171
      %1180 = vmatprep.subr.mxu0 0.0
      %1181 = vmatpush1.msra.mxu0 %v1170
      %1182 = vmatprep.subr.mxu0 0.0
      %1183 = vmatpush1.msra.mxu0 %v1169
      %1184 = vmatprep.subr.mxu0 0.0
      %1185 = vmatpush1.msra.mxu0 %v1168
      %1186 = vmatprep.subr.mxu0 0.0
      %1187 = vmatpush1.msra.mxu0 %v1167
      %1188 = vmatprep.subr.mxu0 0.0
      %1189 = vmatpush1.msra.mxu0 %v1166
      %1190 = vmatprep.subr.mxu0 0.0
      %1191 = vmatpush1.msra.mxu0 %v1165
      %1192 = vmatprep.subr.mxu0 0.0
      %1193 = vmatpush1.msra.mxu0 %v1164
      %1194 = vmatprep.subr.mxu0 0.0
      %1195 = vmatpush1.msra.mxu0 %v1163
      %1196 = vmatprep.subr.mxu0 0.0
      %1197 = vmatpush1.msra.mxu0 %v1162
      %1198 = vmatprep.subr.mxu0 0.0
      %1199 = vmatpush1.msra.mxu0 %v1161
      %1200 = vmatprep.subr.mxu0 0.0
      %1201 = vmatpush1.msra.mxu0 %v1160
      %1202 = vmatprep.subr.mxu0 0.0
      %1203 = vmatpush1.msra.mxu0 %v1159
      %1204 = vmatprep.subr.mxu0 0.0
      %1205 = vmatpush1.msra.mxu0 %v1158
      %1206 = vmatprep.subr.mxu0 0.0
      %1207 = vmatpush2.msra.mxu0 0.0
      %1208 = vmatprep.subr.mxu0 0.0
      %1209 = vmatpush2.msra.mxu0 0.0
      %1210 = vmatprep.subr.mxu0 0.0
      %1211 = vmatpush2.msra.mxu0 0.0
      %1212 = vmatprep.subr.mxu0 0.0
      %1213 = vmatpush2.msra.mxu0 0.0
      %1214 = vmatprep.subr.mxu0 0.0
      %1215 = vmatpush2.msra.mxu0 0.0
      %1216 = vmatprep.subr.mxu0 0.0
      %1217 = vmatpush2.msra.mxu0 0.0
      %1218 = vmatprep.subr.mxu0 0.0
      %1219 = vmatpush2.msra.mxu0 0.0
      %1220 = vmatprep.subr.mxu0 0.0
      %1221 = vmatpush2.msra.mxu0 0.0
      %1222 = vmatprep.subr.mxu0 0.0
      %1223 = vmatpush2.msra.mxu0 0.0
      %1224 = vmatprep.subr.mxu0 0.0
      %1225 = vmatpush2.msra.mxu0 0.0
      %1226 = vmatprep.subr.mxu0 0.0
      %1227 = vmatpush2.msra.mxu0 0.0
      %1228 = vmatprep.subr.mxu0 0.0
      %1229 = vmatpush2.msra.mxu0 0.0
      %1230 = vmatprep.subr.mxu0 0.0
      %1231 = vmatpush2.msra.mxu0 0.0
      %1232 = vmatprep.subr.mxu0 0.0
      %1233 = vmatpush2.msra.mxu0 0.0
      %1234 = vmatprep.subr.mxu0 0.0
      %1235 = vmatpush2.msra.mxu0 0.0
      %1236 = vmatprep.subr.mxu0 0.0
      %1237 = vmatpush2.msra.mxu0 0.0
      %1238 = vmatprep.mubr.f32.mxu0 0.0
      %1239 = vmatmul.mubr.f32.gmra.mxu0 %v1155
      %v1240 = vpop.f32.mrf.mxu0
      %v1241 = vadd.f32 0.0, %v1240
      %v1242 = vpop.f32.mrf.mxu0
      %1243 = vmatprep.mubr.f32.mxu0 0.0
      %1244 = vmatmul.mubr.f32.gmra.mxu0 %v1156
      %v1245 = vpop.f32.mrf.mxu0
      %v1246 = vadd.f32 0.0, %v1245
      %v1247 = vpop.f32.mrf.mxu0
      %1248 = vdwg.mxu0
      %v1249 = vadd.f32 %v1153, %v1241
      %v1250 = vadd.f32 %v1154, %v1246
      %v1251 = vld [vmem:[%s5] sm:$0x1]
      %v1253 = vlaneseq
      %v1254 = vshrl.u32 %v1253, 7
      %v1255 = vsub.s32 0, %v1254
      %v1256 = vrot.slane %v1251, %v1255
      %v1258 = vmul.f32 %v1249, %v1256
      %v1259 = vmul.f32 %v1250, %v1256
      %v1260 = vld [vmem:[%s6] sm:$0x1]
      %v1262 = vlaneseq
      %v1263 = vshrl.u32 %v1262, 7
      %v1264 = vsub.s32 0, %v1263
      %v1265 = vrot.slane %v1260, %v1264
      %v1267 = vadd.f32 %v1258, %v1265
      %v1268 = vadd.f32 %v1259, %v1265
      %v1269 = vmax.f32 %v1267, 0.0
      %v1270 = vmax.f32 %v1268, 0.0
      %1271 = vst [vmem:[%s278] sm:$0xff] %v1269
      %1272 = vst [vmem:[%s278 + $0x8] sm:$0xff] %v1270
      %p1273 = scmp.lt.s32.totalorder %s18, 1
      %s1274 = scalar_select %p1273, %s18, 1
      %s1275 = smul.addr %s1274, 2
      %s1276 = smul.addr %s1275, 8
      %s1277 = scalar_lea.vmem %s7, %s1276
      // Predicated region
      $region49: #{double_conv_forward.1} parent=47 // pred_check
        %p1278 = pneg %p188
      $region50: #{double_conv_forward.1} parent=47 // pred_check_branch
        %1280 = sbr.rel (%p1278) target = $region52
      $region51: #{double_conv_forward.1} parent=47 // pred_region
        _
      $region52: #{double_conv_forward.1} parent=47 // pred_fallthru
        _
    $region48: #{double_conv_forward.1} parent=5 // pred_fallthru
      _
    %p1281 = scmp.le.s32.totalorder 2, %s13
    // Predicated region
    $region53: #{double_conv_forward.1} parent=5 // pred_check
      %p1282 = pneg %p1281
    $region54: #{double_conv_forward.1} parent=5 // pred_check_branch
      %1284 = sbr.rel (%p1282) target = $region56
    $region55: #{double_conv_forward.1} parent=5 // pred_region
      %s1285 = ssub.s32 %s13, 2
      // Predicated region
      $region57: #{double_conv_forward.1} parent=55 // pred_check
        %p1286 = pneg %p194
      $region58: #{double_conv_forward.1} parent=55 // pred_check_branch
        %1288 = sbr.rel (%p1286) target = $region60
      $region59: #{double_conv_forward.1} parent=55 // pred_region
        %p1289 = scmp.lt.s32.totalorder %s19, 1
        %s1290 = scalar_select %p1289, %s19, 1
        %s1291 = smul.addr %s1290, 2
        %s1292 = smul.addr %s1291, 8
        %s1293 = scalar_lea.vmem %s7, %s1292
      $region60: #{double_conv_forward.1} parent=55 // pred_fallthru
        _
    $region56: #{double_conv_forward.1} parent=5 // pred_fallthru
      _
  $region6: #{double_conv_forward.1} parent=0 // loop_footer
    %s17 = sadd.s32 1, %s13
  $region7: #{double_conv_forward.1} parent=0 // loop_footer_branch
    %12 = sbr.rel target = $region3
  $region8: #{double_conv_forward.1} parent=0 // loop_exit
    _

</llo_original>
